<compile_context>
chip_gen: v7x
topology: tpu7x:2x2x1
jax: 0.10.0
libtpu: 0.0.40
codegen_flags: <defaults>
</compile_context>

<pallas_src>
import functools

import jax
import jax.numpy as jnp
from jax import lax
from jax.experimental import pallas as pl
from jax.experimental.pallas import tpu as pltpu


def _gat_kernel(h_ref, adj_ref, w_ref, a1_ref, a2r_ref, o_ref, wh_ref, *,
                alpha, concat):
    """One row-stripe of the GAT layer.

    h_ref   : (N, F_in)   full node features      (fetched once: constant block)
    adj_ref : (TM, N)     bf16 0/1 edge mask stripe for this grid step's rows
    w_ref   : (F_in, F_out)
    a1_ref  : (F_out, 1)  first half of `a`
    a2r_ref : (1, F_out)  second half of `a`, as a row
    o_ref   : (TM, F_out) output stripe
    wh_ref  : (N, F_out)  f32 VMEM scratch holding the full Wh
    """
    i = pl.program_id(0)
    tm = o_ref.shape[0]

    # Wh = h @ W for the whole graph (bf16 MXU operands, f32 accumulate).
    # Recomputed every stripe so the grid axis can stay "parallel" (megacore).
    wh = jnp.dot(h_ref[...].astype(jnp.bfloat16),
                 w_ref[...].astype(jnp.bfloat16),
                 preferred_element_type=jnp.float32)                 # (N, F_out)
    wh_ref[...] = wh

    # Wh2^T as a (1, N) row: contract the feature axes directly so no separate
    # (N,1)->(1,N) relayout of the score column is needed.
    s2t = lax.dot_general(a2r_ref[...], wh, (((1,), (1,)), ((), ())),
                          preferred_element_type=jnp.float32)        # (1, N)

    # Wh1 only for this stripe of query rows.
    row0 = pl.multiple_of(i * tm, tm)
    wh_q = wh_ref[pl.ds(row0, tm), :]                                # (TM, F_out)
    s1 = jnp.dot(wh_q, a1_ref[...],
                 preferred_element_type=jnp.float32)                 # (TM, 1)

    # e = LeakyReLU(Wh1 + Wh2^T); mask non-edges to -9e15 (as in the reference).
    e = s1 + s2t                                                     # (TM, N)
    e = jnp.where(e > 0.0, e, alpha * e)
    e = jnp.where(adj_ref[...] > 0, e, -9e15)

    # Numerically stable row softmax; masked entries underflow to exactly 0.
    m = jnp.max(e, axis=-1, keepdims=True)
    p = jnp.exp(e - m)
    att = p * pl.reciprocal(jnp.sum(p, axis=-1, keepdims=True), approx=True)

    # TODO(synk): F.dropout(att) in training mode not implemented (eval parity).

    # h' = att @ Wh  (bf16 MXU operands, f32 accumulate).
    hp = jnp.dot(att.astype(jnp.bfloat16), wh.astype(jnp.bfloat16),
                 preferred_element_type=jnp.float32)                 # (TM, F_out)

    if concat:
        # ELU. exp(min(x,0))-1 instead of expm1 for guaranteed Mosaic lowering;
        # the clamp also avoids computing exp of large positives on the
        # discarded branch.
        neg = jnp.exp(jnp.minimum(hp, 0.0)) - 1.0
        hp = jnp.where(hp > 0.0, hp, neg)
    o_ref[...] = hp


def gat_layer(h, adj, params, *, alpha, concat=True, block_rows=128):
    """Forward of GraphAttentionLayer(h, adj) as a single Pallas kernel."""
    n, in_f = h.shape
    out_f = params["W"].shape[1]

    # Row-stripe size: multiple of 8 sublanes and an exact divisor of N,
    # otherwise fall back to the full array (single grid step).
    tm = block_rows if (n % block_rows == 0 and block_rows % 8 == 0) else n
    grid = (n // tm,)

    # Only the >0 pattern of adj is used — ship it as a compact bf16 0/1 mask.
    adj_mask = (adj > 0).astype(jnp.bfloat16)

    kern = functools.partial(_gat_kernel, alpha=alpha, concat=concat)
    return pl.pallas_call(
        kern,
        out_shape=jax.ShapeDtypeStruct((n, out_f), jnp.float32),
        grid_spec=pltpu.PrefetchScalarGridSpec(
            num_scalar_prefetch=0,
            grid=grid,
            in_specs=[
                pl.BlockSpec((n, in_f), lambda i: (0, 0)),      # h (full, once)
                pl.BlockSpec((tm, n), lambda i: (i, 0)),        # adj mask stripe
                pl.BlockSpec((in_f, out_f), lambda i: (0, 0)),  # W
                pl.BlockSpec((out_f, 1), lambda i: (0, 0)),     # a[:F]
                pl.BlockSpec((1, out_f), lambda i: (0, 0)),     # a[F:] as row
            ],
            out_specs=pl.BlockSpec((tm, out_f), lambda i: (i, 0)),
            scratch_shapes=[pltpu.VMEM((n, out_f), jnp.float32)],
        ),
        compiler_params=pltpu.CompilerParams(
            dimension_semantics=("parallel",),      # shard stripes on megacore
            vmem_limit_bytes=48 * 1024 * 1024,      # raise scoped VMEM for big N
        ),
    )(h, adj_mask, params["W"], params["a1"], params["a2r"])


def init_gat_params(key, in_features, out_features, gain=1.414):
    """Mirror xavier_uniform_ init of W (in,out) and a (2*out, 1)."""
    kw, ka = jax.random.split(key)
    bw = gain * (6.0 / (in_features + out_features)) ** 0.5
    W = jax.random.uniform(kw, (in_features, out_features), jnp.float32, -bw, bw)
    ba = gain * (6.0 / (2 * out_features + 1)) ** 0.5
    a = jax.random.uniform(ka, (2 * out_features, 1), jnp.float32, -ba, ba)
    return dict(
        W=W,                               # (F_in, F_out), used as h @ W
        a1=a[:out_features, :],            # (F_out, 1)
        a2r=a[out_features:, :].T,         # (1, F_out)
        a=a,                               # original layout (for the reference)
    )


def gat_reference(h, adj, W, a, *, alpha, concat):
    """Pure-JAX f32 reference matching the PyTorch forward."""
    Wh = h @ W
    f = W.shape[1]
    e = Wh @ a[:f, :] + (Wh @ a[f:, :]).T
    e = jnp.where(e > 0, e, alpha * e)
    e = jnp.where(adj > 0, e, jnp.float32(-9e15))
    att = jax.nn.softmax(e, axis=1)
    hp = att @ Wh
    return jnp.where(hp > 0, hp, jnp.expm1(hp)) if concat else hp


if __name__ == "__main__":
    N, in_features, out_features, alpha = 256, 64, 128, 0.2

    key = jax.random.PRNGKey(0)
    k_adj, k_h, k_p = jax.random.split(key, 3)

    # Deterministic sparse symmetric adjacency with self-loops.
    a_rand = (jax.random.uniform(k_adj, (N, N)) < 0.05).astype(jnp.float32)
    adj = jnp.minimum(jnp.maximum(a_rand, a_rand.T) + jnp.eye(N, dtype=jnp.float32), 1.0)

    h = jax.random.normal(k_h, (N, in_features), jnp.float32)
    params = init_gat_params(k_p, in_features, out_features)

    # concat=True branch (hidden layer of a GAT)
    out = jax.block_until_ready(gat_layer(h, adj, params, alpha=alpha, concat=True))
    ref = gat_reference(h, adj, params["W"], params["a"], alpha=alpha, concat=True)
    assert out.shape == (N, out_features), out.shape
    assert not bool(jnp.any(jnp.isnan(out)))
    rel = float(jnp.linalg.norm(out - ref) / jnp.linalg.norm(ref))
    assert rel < 0.05, rel
    assert float(jnp.max(jnp.abs(out - ref))) < 0.5

    # concat=False branch (output layer, no ELU inside)
    out2 = jax.block_until_ready(gat_layer(h, adj, params, alpha=alpha, concat=False))
    ref2 = gat_reference(h, adj, params["W"], params["a"], alpha=alpha, concat=False)
    assert not bool(jnp.any(jnp.isnan(out2)))
    rel2 = float(jnp.linalg.norm(out2 - ref2) / jnp.linalg.norm(ref2))
    assert rel2 < 0.05, rel2

    print("KERNEL_OK")
</pallas_src>

<mosaic_0001>
module attributes {stable_mosaic.version = 11 : i64} {
  func.func @_gat_kernel(%arg0: i32, %arg1: memref<256x64xf32, #tpu.memory_space<vmem>>, %arg2: memref<128x256xbf16, #tpu.memory_space<vmem>>, %arg3: memref<64x128xf32, #tpu.memory_space<vmem>>, %arg4: memref<128x1xf32, #tpu.memory_space<vmem>>, %arg5: memref<1x128xf32, #tpu.memory_space<vmem>>, %arg6: memref<128x128xf32, #tpu.memory_space<vmem>>, %arg7: memref<256x128xf32, #tpu.memory_space<vmem>>) attributes {dimension_semantics = [#tpu.dimension_semantics<parallel>], iteration_bounds = array<i64: 2>, scalar_prefetch = 0 : i64, scratch_operands = 1 : i64, tpu.core_type = #tpu.core_type<tc>, window_params = [{pipeline_mode = #tpu.pipeline_mode<synchronous>, transform_indices = @transform_0, window_bounds = array<i64: 256, 64>}, {transform_indices = @transform_1, window_bounds = array<i64: 128, 256>}, {pipeline_mode = #tpu.pipeline_mode<synchronous>, transform_indices = @transform_2, window_bounds = array<i64: 64, 128>}, {pipeline_mode = #tpu.pipeline_mode<synchronous>, transform_indices = @transform_3, window_bounds = array<i64: 128, 1>}, {pipeline_mode = #tpu.pipeline_mode<synchronous>, transform_indices = @transform_4, window_bounds = array<i64: 1, 128>}, {transform_indices = @transform_5, window_bounds = array<i64: 128, 128>}]} {
    %c0 = arith.constant 0 : index
    %c0_0 = arith.constant 0 : index
    %0 = vector.load %arg1[%c0, %c0_0] : memref<256x64xf32, #tpu.memory_space<vmem>>, vector<256x64xf32>
    %1 = arith.truncf %0 : vector<256x64xf32> to vector<256x64xbf16>
    %c0_1 = arith.constant 0 : index
    %c0_2 = arith.constant 0 : index
    %2 = vector.load %arg3[%c0_1, %c0_2] : memref<64x128xf32, #tpu.memory_space<vmem>>, vector<64x128xf32>
    %3 = arith.truncf %2 : vector<64x128xf32> to vector<64x128xbf16>
    %cst = arith.constant dense<0.000000e+00> : vector<256x128xf32>
    %4 = tpu.matmul %1, %3, %cst {dimension_numbers = #tpu.dot_dimension_numbers<[1], [0], [0], [1], [0, 0, 1, 1], [], []>} : vector<256x64xbf16>, vector<64x128xbf16>, vector<256x128xf32> -> vector<256x128xf32>
    %c0_3 = arith.constant 0 : index
    %c0_4 = arith.constant 0 : index
    %5 = vector.load %arg7[%c0_3, %c0_4] : memref<256x128xf32, #tpu.memory_space<vmem>>, vector<256x128xf32>
    tpu.vector_store %arg7[%c0_3, %c0_4], %4 {strides = array<i32>} : memref<256x128xf32, #tpu.memory_space<vmem>>, vector<256x128xf32>,
    %c0_5 = arith.constant 0 : index
    %c0_6 = arith.constant 0 : index
    %6 = vector.load %arg5[%c0_5, %c0_6] : memref<1x128xf32, #tpu.memory_space<vmem>>, vector<1x128xf32>
    %cst_7 = arith.constant dense<0.000000e+00> : vector<1x256xf32>
    %7 = tpu.matmul %6, %4, %cst_7 {dimension_numbers = #tpu.dot_dimension_numbers<[1], [1], [0], [0], [0, 0, 1, 0], [], []>} : vector<1x128xf32>, vector<256x128xf32>, vector<1x256xf32> -> vector<1x256xf32>
    %c128_i32 = arith.constant 128 : i32
    %8 = arith.muli %arg0, %c128_i32 : i32
    %9 = tpu.assume_multiple %8, 128 : i32
    %10 = arith.index_cast %9 : i32 to index
    %c0_8 = arith.constant 0 : index
    %11 = vector.load %arg7[%10, %c0_8] : memref<256x128xf32, #tpu.memory_space<vmem>>, vector<128x128xf32>
    %c0_9 = arith.constant 0 : index
    %c0_10 = arith.constant 0 : index
    %12 = vector.load %arg4[%c0_9, %c0_10] : memref<128x1xf32, #tpu.memory_space<vmem>>, vector<128x1xf32>
    %cst_11 = arith.constant dense<0.000000e+00> : vector<128x1xf32>
    %13 = tpu.matmul %11, %12, %cst_11 {dimension_numbers = #tpu.dot_dimension_numbers<[1], [0], [0], [1], [0, 0, 1, 1], [], []>} : vector<128x128xf32>, vector<128x1xf32>, vector<128x1xf32> -> vector<128x1xf32>
    %14 = vector.broadcast %13 : vector<128x1xf32> to vector<128x256xf32>
    %15 = vector.broadcast %7 : vector<1x256xf32> to vector<128x256xf32>
    %16 = arith.addf %14, %15 : vector<128x256xf32>
    %cst_12 = arith.constant 0.000000e+00 : f32
    %17 = vector.broadcast %cst_12 : f32 to vector<128x256xf32>
    %18 = arith.cmpf ogt, %16, %17 : vector<128x256xf32>
    %cst_13 = arith.constant 2.000000e-01 : f32
    %19 = vector.broadcast %cst_13 : f32 to vector<128x256xf32>
    %20 = arith.mulf %19, %16 : vector<128x256xf32>
    %21 = arith.select %18, %16, %20 : vector<128x256xi1>, vector<128x256xf32>
    %c0_14 = arith.constant 0 : index
    %c0_15 = arith.constant 0 : index
    %22 = vector.load %arg2[%c0_14, %c0_15] : memref<128x256xbf16, #tpu.memory_space<vmem>>, vector<128x256xbf16>
    %cst_16 = arith.constant 0.000000e+00 : bf16
    %23 = vector.broadcast %cst_16 : bf16 to vector<128x256xbf16>
    %24 = arith.cmpf ogt, %22, %23 : vector<128x256xbf16>
    %cst_17 = arith.constant -9.000000e+15 : f32
    %25 = vector.broadcast %cst_17 : f32 to vector<128x256xf32>
    %26 = arith.select %24, %21, %25 : vector<128x256xi1>, vector<128x256xf32>
    %cst_18 = arith.constant dense<0xFF800000> : vector<128xf32>
    %27 = vector.multi_reduction <maximumf>, %26, %cst_18 [1] : vector<128x256xf32> to vector<128xf32>
    %28 = vector.shape_cast %27 : vector<128xf32> to vector<128x1xf32>
    %29 = vector.broadcast %28 : vector<128x1xf32> to vector<128x256xf32>
    %30 = arith.subf %26, %29 : vector<128x256xf32>
    %31 = math.exp %30 : vector<128x256xf32>
    %cst_19 = arith.constant dense<0.000000e+00> : vector<128xf32>
    %32 = vector.multi_reduction <add>, %31, %cst_19 [1] : vector<128x256xf32> to vector<128xf32>
    %33 = vector.shape_cast %32 : vector<128xf32> to vector<128x1xf32>
    %34 = tpu.reciprocal %33 {approx = true} : vector<128x1xf32> -> vector<128x1xf32>
    %35 = vector.broadcast %34 : vector<128x1xf32> to vector<128x256xf32>
    %36 = arith.mulf %31, %35 : vector<128x256xf32>
    %37 = arith.truncf %36 : vector<128x256xf32> to vector<128x256xbf16>
    %38 = arith.truncf %4 : vector<256x128xf32> to vector<256x128xbf16>
    %cst_20 = arith.constant dense<0.000000e+00> : vector<128x128xf32>
    %39 = tpu.matmul %37, %38, %cst_20 {dimension_numbers = #tpu.dot_dimension_numbers<[1], [0], [0], [1], [0, 0, 1, 1], [], []>} : vector<128x256xbf16>, vector<256x128xbf16>, vector<128x128xf32> -> vector<128x128xf32>
    %cst_21 = arith.constant 0.000000e+00 : f32
    %40 = vector.broadcast %cst_21 : f32 to vector<128x128xf32>
    %41 = arith.minimumf %39, %40 : vector<128x128xf32>
    %42 = math.exp %41 : vector<128x128xf32>
    %cst_22 = arith.constant 1.000000e+00 : f32
    %43 = vector.broadcast %cst_22 : f32 to vector<128x128xf32>
    %44 = arith.subf %42, %43 : vector<128x128xf32>
    %cst_23 = arith.constant 0.000000e+00 : f32
    %45 = vector.broadcast %cst_23 : f32 to vector<128x128xf32>
    %46 = arith.cmpf ogt, %39, %45 : vector<128x128xf32>
    %47 = arith.select %46, %39, %44 : vector<128x128xi1>, vector<128x128xf32>
    %c0_24 = arith.constant 0 : index
    %c0_25 = arith.constant 0 : index
    %48 = vector.load %arg6[%c0_24, %c0_25] : memref<128x128xf32, #tpu.memory_space<vmem>>, vector<128x128xf32>
    tpu.vector_store %arg6[%c0_24, %c0_25], %47 {strides = array<i32>} : memref<128x128xf32, #tpu.memory_space<vmem>>, vector<128x128xf32>,
    return
  }
  func.func @transform_0(%arg0: i32) -> (i32, i32) {
    %c0_i32 = arith.constant 0 : i32
    %c0_i32_0 = arith.constant 0 : i32
    %c0_i32_1 = arith.constant 0 : i32
    return %c0_i32, %c0_i32_0 : i32, i32
  }
  func.func @transform_1(%arg0: i32) -> (i32, i32) {
    %c0_i32 = arith.constant 0 : i32
    %c0_i32_0 = arith.constant 0 : i32
    return %arg0, %c0_i32 : i32, i32
  }
  func.func @transform_2(%arg0: i32) -> (i32, i32) {
    %c0_i32 = arith.constant 0 : i32
    %c0_i32_0 = arith.constant 0 : i32
    %c0_i32_1 = arith.constant 0 : i32
    return %c0_i32, %c0_i32_0 : i32, i32
  }
  func.func @transform_3(%arg0: i32) -> (i32, i32) {
    %c0_i32 = arith.constant 0 : i32
    %c0_i32_0 = arith.constant 0 : i32
    %c0_i32_1 = arith.constant 0 : i32
    return %c0_i32, %c0_i32_0 : i32, i32
  }
  func.func @transform_4(%arg0: i32) -> (i32, i32) {
    %c0_i32 = arith.constant 0 : i32
    %c0_i32_0 = arith.constant 0 : i32
    %c0_i32_1 = arith.constant 0 : i32
    return %c0_i32, %c0_i32_0 : i32, i32
  }
  func.func @transform_5(%arg0: i32) -> (i32, i32) {
    %c0_i32 = arith.constant 0 : i32
    %c0_i32_0 = arith.constant 0 : i32
    return %arg0, %c0_i32 : i32, i32
  }
}

</mosaic_0001>

<llo_original>
// kernel: tpu_custom_call.1
$region0: #{tpu_custom_call.1}
  #allocation0 [shape = 'u32[]', space=smem, size = 0x4, offset = 0x4, fixed_abs, tag = 'smem constant byte address 0x4 - core index']
  #allocation1 [shape = 'u32[144,128]{1,0:T(1,128)}', space=vmem, size = 0x12000, scoped, tag = 'internal scratch']
  #allocation2 [shape = 'f32[256,128]{1,0:T(8,128)}', space=vmem, size = 0x20000, scoped, tag = 'scratch operand']
  %s0 = inlined_call_operand.vmem [shape: f32[256,64], index: 0, kind: input, shape index: {}]
  %s1 = inlined_call_operand.vmem [shape: bf16[256,256], index: 1, kind: input, shape index: {}]
  %s2 = inlined_call_operand.vmem [shape: f32[64,128], index: 2, kind: input, shape index: {}]
  %s3 = inlined_call_operand.vmem [shape: f32[128,1], index: 3, kind: input, shape index: {}]
  %s4 = inlined_call_operand.vmem [shape: f32[1,128], index: 4, kind: input, shape index: {}]
  %s5 = inlined_call_operand.hbm [shape: f32[256,128], index: 5, kind: output, shape index: {}]
  %s6 = sld [smem:[#allocation0]]
  $region53: #{tpu_custom_call.1} parent=0
    _
  %s8 = ssub.s32 1, %s6
  %s9 = scalar_select 0, %s8, %s6
  $region1: #{tpu_custom_call.1} parent=0
    #allocation3 [shape = 'u8[131072]{0}', space=vmem, size = 0x20000, scoped, tag = 'output window, operand 0']
    #allocation4 [shape = 's32[2]{0}', space=sflag, size = 0x8, scoped, tag = 'scoped memory for tpu_custom_call.1']
    %10 = vsyncpa [#allocation4], 0
    %s11 = scalar_lea.sflag [#allocation4], 1
    %12 = vsyncpa %s11, 0
    loop: start=0, step=1, limit=4
    $region2: #{tpu_custom_call.1} parent=1 // loop_pre_header
      _
    $region3: #{tpu_custom_call.1} parent=1 // loop_header
      %s14 = sphi 0, %s18
      %p15 = scmp.ge.s32.totalorder %s14, 4
      %s22 = sphi 0, %s22
      %s24 = sphi 0, %s22
      %s25 = sphi 0, %s24
      %s39 = sphi 0, %s25
      %s45 = sphi 0, %s47
      %s48 = sphi 0, %s45
      %s49 = sphi 0, %s48
      %s65 = sphi 0, %s49
      %s69 = sphi 0, %s69
      %s71 = sphi 0, %s69
      %s72 = sphi 0, %s71
      %s86 = sphi 0, %s72
      %s90 = sphi 0, %s90
      %s92 = sphi 0, %s90
      %s93 = sphi 0, %s92
      %s107 = sphi 0, %s93
      %s111 = sphi 0, %s111
      %s113 = sphi 0, %s111
      %s114 = sphi 0, %s113
      %s128 = sphi 0, %s114
      %s134 = sphi 0, %s136
      %s137 = sphi 0, %s134
      %s138 = sphi 0, %s137
      %s154 = sphi 0, %s138
    $region4: #{tpu_custom_call.1} parent=1 // loop_header_branch
      %17 = sbr.rel (%p15) target = $region8
    $region5: #{tpu_custom_call.1} parent=1 // loop_body
      %s19 = ssub.s32 %s14, 1
      %s20 = ssub.s32 %s14, 2
      %s21 = sadd.s32 %s14, 1
      %s23 = sadd.s32 %s22, 1
      %p26 = scmp.eq.s32.totalorder %s14, 1
      %p27 = scmp.ne.s32.totalorder %s22, %s24
      %p28 = scmp.eq.s32.totalorder %s14, 0
      %p29 = por %p27, %p28
      %p30 = scmp.ne.s32.totalorder %s22, %s24
      %p31 = scmp.eq.s32.totalorder %s19, 1
      %p32 = por %p30, %p31
      %p33 = scmp.ne.s32.totalorder %s24, %s25
      %p34 = scmp.eq.s32.totalorder %s19, 0
      %p35 = por %p33, %p34
      %p36 = scmp.ne.s32.totalorder %s24, %s25
      %p37 = scmp.eq.s32.totalorder %s20, 1
      %p38 = por %p36, %p37
      %p40 = scmp.ne.s32.totalorder %s25, %s39
      %p41 = scmp.eq.s32.totalorder %s20, 0
      %p42 = por %p40, %p41
      %s43 = ssub.s32 %s14, %s21
      %p44 = scmp.eq.s32.totalorder %s43, 0
      %s46 = sadd.s32 %s45, 1
      %s47 = scalar_select %p44, %s45, %s46
      %p50 = pneg %p44
      %p51 = scmp.eq.s32.totalorder %s14, 1
      %p52 = por %p50, %p51
      %p53 = scmp.ne.s32.totalorder %s45, %s48
      %p54 = scmp.eq.s32.totalorder %s14, 0
      %p55 = por %p53, %p54
      %p56 = scmp.ne.s32.totalorder %s45, %s48
      %p57 = scmp.eq.s32.totalorder %s19, 1
      %p58 = por %p56, %p57
      %p59 = scmp.ne.s32.totalorder %s48, %s49
      %p60 = scmp.eq.s32.totalorder %s19, 0
      %p61 = por %p59, %p60
      %p62 = scmp.ne.s32.totalorder %s48, %s49
      %p63 = scmp.eq.s32.totalorder %s20, 1
      %p64 = por %p62, %p63
      %p66 = scmp.ne.s32.totalorder %s49, %s65
      %p67 = scmp.eq.s32.totalorder %s20, 0
      %p68 = por %p66, %p67
      %s70 = sadd.s32 %s69, 1
      %p73 = scmp.eq.s32.totalorder %s14, 1
      %p74 = scmp.ne.s32.totalorder %s69, %s71
      %p75 = scmp.eq.s32.totalorder %s14, 0
      %p76 = por %p74, %p75
      %p77 = scmp.ne.s32.totalorder %s69, %s71
      %p78 = scmp.eq.s32.totalorder %s19, 1
      %p79 = por %p77, %p78
      %p80 = scmp.ne.s32.totalorder %s71, %s72
      %p81 = scmp.eq.s32.totalorder %s19, 0
      %p82 = por %p80, %p81
      %p83 = scmp.ne.s32.totalorder %s71, %s72
      %p84 = scmp.eq.s32.totalorder %s20, 1
      %p85 = por %p83, %p84
      %p87 = scmp.ne.s32.totalorder %s72, %s86
      %p88 = scmp.eq.s32.totalorder %s20, 0
      %p89 = por %p87, %p88
      %s91 = sadd.s32 %s90, 1
      %p94 = scmp.eq.s32.totalorder %s14, 1
      %p95 = scmp.ne.s32.totalorder %s90, %s92
      %p96 = scmp.eq.s32.totalorder %s14, 0
      %p97 = por %p95, %p96
      %p98 = scmp.ne.s32.totalorder %s90, %s92
      %p99 = scmp.eq.s32.totalorder %s19, 1
      %p100 = por %p98, %p99
      %p101 = scmp.ne.s32.totalorder %s92, %s93
      %p102 = scmp.eq.s32.totalorder %s19, 0
      %p103 = por %p101, %p102
      %p104 = scmp.ne.s32.totalorder %s92, %s93
      %p105 = scmp.eq.s32.totalorder %s20, 1
      %p106 = por %p104, %p105
      %p108 = scmp.ne.s32.totalorder %s93, %s107
      %p109 = scmp.eq.s32.totalorder %s20, 0
      %p110 = por %p108, %p109
      %s112 = sadd.s32 %s111, 1
      %p115 = scmp.eq.s32.totalorder %s14, 1
      %p116 = scmp.ne.s32.totalorder %s111, %s113
      %p117 = scmp.eq.s32.totalorder %s14, 0
      %p118 = por %p116, %p117
      %p119 = scmp.ne.s32.totalorder %s111, %s113
      %p120 = scmp.eq.s32.totalorder %s19, 1
      %p121 = por %p119, %p120
      %p122 = scmp.ne.s32.totalorder %s113, %s114
      %p123 = scmp.eq.s32.totalorder %s19, 0
      %p124 = por %p122, %p123
      %p125 = scmp.ne.s32.totalorder %s113, %s114
      %p126 = scmp.eq.s32.totalorder %s20, 1
      %p127 = por %p125, %p126
      %p129 = scmp.ne.s32.totalorder %s114, %s128
      %p130 = scmp.eq.s32.totalorder %s20, 0
      %p131 = por %p129, %p130
      %s132 = ssub.s32 %s14, %s21
      %p133 = scmp.eq.s32.totalorder %s132, 0
      %s135 = sadd.s32 %s134, 1
      %s136 = scalar_select %p133, %s134, %s135
      %p139 = pneg %p133
      %p140 = scmp.eq.s32.totalorder %s14, 1
      %p141 = por %p139, %p140
      %p142 = scmp.ne.s32.totalorder %s134, %s137
      %p143 = scmp.eq.s32.totalorder %s14, 0
      %p144 = por %p142, %p143
      %p145 = scmp.ne.s32.totalorder %s134, %s137
      %p146 = scmp.eq.s32.totalorder %s19, 1
      %p147 = por %p145, %p146
      %p148 = scmp.ne.s32.totalorder %s137, %s138
      %p149 = scmp.eq.s32.totalorder %s19, 0
      %p150 = por %p148, %p149
      %p151 = scmp.ne.s32.totalorder %s137, %s138
      %p152 = scmp.eq.s32.totalorder %s20, 1
      %p153 = por %p151, %p152
      %p155 = scmp.ne.s32.totalorder %s138, %s154
      %p156 = scmp.eq.s32.totalorder %s20, 0
      %p157 = por %p155, %p156
      %p158 = scmp.le.s32.totalorder 1, %s14
      %p159 = scmp.lt.s32.totalorder %s14, 3
      %p160 = pnand %p158, %p159
      %p161 = pneg %p160
      // Predicated region
      $region9: #{tpu_custom_call.1} parent=5 // pred_check
        _
      $region10: #{tpu_custom_call.1} parent=5 // pred_check_branch
        %163 = sbr.rel (%p160) target = $region12
      $region11: #{tpu_custom_call.1} parent=5 // pred_region
        %s164 = ssub.s32 %s14, 1
        // Predicated region
        $region13: #{tpu_custom_call.1} parent=11 // pred_check
          %p165 = pneg %p35
        $region14: #{tpu_custom_call.1} parent=11 // pred_check_branch
          %167 = sbr.rel (%p165) target = $region16
        $region15: #{tpu_custom_call.1} parent=11 // pred_region
          _
        $region16: #{tpu_custom_call.1} parent=11 // pred_fallthru
          _
        // Predicated region
        $region17: #{tpu_custom_call.1} parent=11 // pred_check
          %p168 = pneg %p82
        $region18: #{tpu_custom_call.1} parent=11 // pred_check_branch
          %170 = sbr.rel (%p168) target = $region20
        $region19: #{tpu_custom_call.1} parent=11 // pred_region
          _
        $region20: #{tpu_custom_call.1} parent=11 // pred_fallthru
          _
        // Predicated region
        $region21: #{tpu_custom_call.1} parent=11 // pred_check
          %p171 = pneg %p103
        $region22: #{tpu_custom_call.1} parent=11 // pred_check_branch
          %173 = sbr.rel (%p171) target = $region24
        $region23: #{tpu_custom_call.1} parent=11 // pred_region
          _
        $region24: #{tpu_custom_call.1} parent=11 // pred_fallthru
          _
        // Predicated region
        $region25: #{tpu_custom_call.1} parent=11 // pred_check
          %p174 = pneg %p124
        $region26: #{tpu_custom_call.1} parent=11 // pred_check_branch
          %176 = sbr.rel (%p174) target = $region28
        $region27: #{tpu_custom_call.1} parent=11 // pred_region
          _
        $region28: #{tpu_custom_call.1} parent=11 // pred_fallthru
          _
      $region12: #{tpu_custom_call.1} parent=5 // pred_fallthru
        _
      %p177 = scmp.lt.s32.totalorder %s14, 2
      // Predicated region
      $region29: #{tpu_custom_call.1} parent=5 // pred_check
        %p178 = pneg %p177
      $region30: #{tpu_custom_call.1} parent=5 // pred_check_branch
        %180 = sbr.rel (%p178) target = $region32
      $region31: #{tpu_custom_call.1} parent=5 // pred_region
        // Predicated region
        $region33: #{tpu_custom_call.1} parent=31 // pred_check
          %p181 = pneg %p55
        $region34: #{tpu_custom_call.1} parent=31 // pred_check_branch
          %183 = sbr.rel (%p181) target = $region36
        $region35: #{tpu_custom_call.1} parent=31 // pred_region
          %s184 = smul.u32 16, %s14
          %p185 = scmp.lt.s32.totalorder %s184, 31
          %s186 = scalar_select %p185, %s184, 31
          %s187 = smul.addr %s186, 2
          %s188 = smul.addr %s187, 4
          %s189 = scalar_lea.vmem %s1, %s188
          %s190 = smul.u32 16, %s14
        $region36: #{tpu_custom_call.1} parent=31 // pred_fallthru
          _
      $region32: #{tpu_custom_call.1} parent=5 // pred_fallthru
        _
      %p191 = scmp.le.s32.totalorder 1, %s14
      %p192 = scmp.lt.s32.totalorder %s14, 3
      %p193 = pnand %p191, %p192
      %p194 = pneg %p193
      // Predicated region
      $region37: #{tpu_custom_call.1} parent=5 // pred_check
        _
      $region38: #{tpu_custom_call.1} parent=5 // pred_check_branch
        %196 = sbr.rel (%p193) target = $region40
      $region39: #{tpu_custom_call.1} parent=5 // pred_region
        %s197 = ssub.s32 %s14, 1
        %p198 = pneg %p35
        %p199 = pneg %p32
        %s200 = smul.u32 16, %s19
        %p201 = scmp.lt.s32.totalorder %s200, 31
        %s202 = scalar_select %p201, %s200, 31
        %s203 = smul.addr %s202, 2
        %s204 = smul.addr %s203, 4
        %s205 = scalar_lea.vmem %s1, %s204
        %p206 = pneg %p61
        %p207 = pneg %p58
        %p208 = pneg %p82
        %p209 = pneg %p79
        %p210 = pneg %p103
        %p211 = pneg %p100
        %p212 = pneg %p124
        %p213 = pneg %p121
        %p214 = pneg %p150
        %p215 = pneg %p147
        %s216 = sand.u32 %s137, 1
        %s217 = scalar_lea.sflag [#allocation4], %s216
        %s218 = sand.u32 %s137, 1
        %s219 = smul.addr %s218, 128
        %s220 = scalar_lea.vmem [#allocation3], %s219
        %s221 = smul.u32 16, %s19
        %p222 = scmp.lt.s32.totalorder %s221, 31
        %s223 = scalar_select %p222, %s221, 31
        %s224 = smul.addr %s223, 2
        %s225 = smul.addr %s224, 4
        %s226 = scalar_lea.vmem %s1, %s225
        %s227 = smul.u32 16, %s19
        %s228 = smul.u32 16, %s19
        %v232 = vld [vmem:[%s0] sm:$0xff]
        %v233 = vld [vmem:[%s0 + $0x8] sm:$0xff]
        %v234 = vld [vmem:[%s0 + $0x10] sm:$0xff]
        %v235 = vld [vmem:[%s0 + $0x18] sm:$0xff]
        %v236 = vld [vmem:[%s0 + $0x20] sm:$0xff]
        %v237 = vld [vmem:[%s0 + $0x28] sm:$0xff]
        %v238 = vld [vmem:[%s0 + $0x30] sm:$0xff]
        %v239 = vld [vmem:[%s0 + $0x38] sm:$0xff]
        %v240 = vld [vmem:[%s0 + $0x40] sm:$0xff]
        %v241 = vld [vmem:[%s0 + $0x48] sm:$0xff]
        %v242 = vld [vmem:[%s0 + $0x50] sm:$0xff]
        %v243 = vld [vmem:[%s0 + $0x58] sm:$0xff]
        %v244 = vld [vmem:[%s0 + $0x60] sm:$0xff]
        %v245 = vld [vmem:[%s0 + $0x68] sm:$0xff]
        %v246 = vld [vmem:[%s0 + $0x70] sm:$0xff]
        %v247 = vld [vmem:[%s0 + $0x78] sm:$0xff]
        %v248 = vld [vmem:[%s0 + $0x80] sm:$0xff]
        %v249 = vld [vmem:[%s0 + $0x88] sm:$0xff]
        %v250 = vld [vmem:[%s0 + $0x90] sm:$0xff]
        %v251 = vld [vmem:[%s0 + $0x98] sm:$0xff]
        %v252 = vld [vmem:[%s0 + $0xa0] sm:$0xff]
        %v253 = vld [vmem:[%s0 + $0xa8] sm:$0xff]
        %v254 = vld [vmem:[%s0 + $0xb0] sm:$0xff]
        %v255 = vld [vmem:[%s0 + $0xb8] sm:$0xff]
        %v256 = vld [vmem:[%s0 + $0xc0] sm:$0xff]
        %v257 = vld [vmem:[%s0 + $0xc8] sm:$0xff]
        %v258 = vld [vmem:[%s0 + $0xd0] sm:$0xff]
        %v259 = vld [vmem:[%s0 + $0xd8] sm:$0xff]
        %v260 = vld [vmem:[%s0 + $0xe0] sm:$0xff]
        %v261 = vld [vmem:[%s0 + $0xe8] sm:$0xff]
        %v262 = vld [vmem:[%s0 + $0xf0] sm:$0xff]
        %v263 = vld [vmem:[%s0 + $0xf8] sm:$0xff]
        %v264 = vpack.c.bf16 %v233, %v232
        %v265 = vpack.c.bf16 %v235, %v234
        %v266 = vpack.c.bf16 %v237, %v236
        %v267 = vpack.c.bf16 %v239, %v238
        %v268 = vpack.c.bf16 %v241, %v240
        %v269 = vpack.c.bf16 %v243, %v242
        %v270 = vpack.c.bf16 %v245, %v244
        %v271 = vpack.c.bf16 %v247, %v246
        %v272 = vpack.c.bf16 %v249, %v248
        %v273 = vpack.c.bf16 %v251, %v250
        %v274 = vpack.c.bf16 %v253, %v252
        %v275 = vpack.c.bf16 %v255, %v254
        %v276 = vpack.c.bf16 %v257, %v256
        %v277 = vpack.c.bf16 %v259, %v258
        %v278 = vpack.c.bf16 %v261, %v260
        %v279 = vpack.c.bf16 %v263, %v262
        %v280 = vld [vmem:[%s2] sm:$0xff]
        %v281 = vld [vmem:[%s2 + $0x8] sm:$0xff]
        %v282 = vld [vmem:[%s2 + $0x10] sm:$0xff]
        %v283 = vld [vmem:[%s2 + $0x18] sm:$0xff]
        %v284 = vld [vmem:[%s2 + $0x20] sm:$0xff]
        %v285 = vld [vmem:[%s2 + $0x28] sm:$0xff]
        %v286 = vld [vmem:[%s2 + $0x30] sm:$0xff]
        %v287 = vld [vmem:[%s2 + $0x38] sm:$0xff]
        %v288 = vpack.c.bf16 %v281, %v280
        %v289 = vpack.c.bf16 %v283, %v282
        %v290 = vpack.c.bf16 %v285, %v284
        %v291 = vpack.c.bf16 %v287, %v286
        %vm292 = vcmask 523264
        %v294 = vsel %vm292, %v264, 0
        %v297 = vsel %vm292, %v265, 0
        %v300 = vsel %vm292, %v266, 0
        %v303 = vsel %vm292, %v267, 0
        %v306 = vsel %vm292, %v268, 0
        %v309 = vsel %vm292, %v269, 0
        %v312 = vsel %vm292, %v270, 0
        %v315 = vsel %vm292, %v271, 0
        %v318 = vsel %vm292, %v272, 0
        %v321 = vsel %vm292, %v273, 0
        %v324 = vsel %vm292, %v274, 0
        %v327 = vsel %vm292, %v275, 0
        %v330 = vsel %vm292, %v276, 0
        %v333 = vsel %vm292, %v277, 0
        %v336 = vsel %vm292, %v278, 0
        %v339 = vsel %vm292, %v279, 0
        %341 = vmatprep.subr.bf16.mxu0 0
        %342 = vmatpush1.bf16.msra.mxu0 %v288
        %343 = vmatprep.subr.bf16.mxu0 0
        %344 = vmatpush1.bf16.msra.mxu0 %v289
        %345 = vmatprep.subr.bf16.mxu0 0
        %346 = vmatpush1.bf16.msra.mxu0 %v290
        %347 = vmatprep.subr.bf16.mxu0 0
        %348 = vmatpush1.bf16.msra.mxu0 %v291
        %349 = vmatprep.subr.bf16.mxu0 0
        %350 = vmatpush1.bf16.msra.mxu0 0
        %351 = vmatprep.subr.bf16.mxu0 0
        %352 = vmatpush1.bf16.msra.mxu0 0
        %353 = vmatprep.subr.bf16.mxu0 0
        %354 = vmatpush1.bf16.msra.mxu0 0
        %355 = vmatprep.subr.bf16.mxu0 0
        %356 = vmatpush1.bf16.msra.mxu0 0
        %357 = vmatprep.subr.bf16.mxu0 0
        %358 = vmatpush1.bf16.msra.mxu0 0
        %359 = vmatprep.subr.bf16.mxu0 0
        %360 = vmatpush1.bf16.msra.mxu0 0
        %361 = vmatprep.subr.bf16.mxu0 0
        %362 = vmatpush1.bf16.msra.mxu0 0
        %363 = vmatprep.subr.bf16.mxu0 0
        %364 = vmatpush1.bf16.msra.mxu0 0
        %365 = vmatprep.subr.bf16.mxu0 0
        %366 = vmatpush1.bf16.msra.mxu0 0
        %367 = vmatprep.subr.bf16.mxu0 0
        %368 = vmatpush1.bf16.msra.mxu0 0
        %369 = vmatprep.subr.bf16.mxu0 0
        %370 = vmatpush1.bf16.msra.mxu0 0
        %371 = vmatprep.subr.bf16.mxu0 0
        %372 = vmatpush1.bf16.msra.mxu0 0
        %373 = vmatprep.mubr.bf16.mxu0 0
        %374 = vmatmul.mubr.bf16.gmra.mrb[0].mxu0 %v294
        %v375 = vpop.f32.mrb[0].mxu0
        %v376 = vadd.f32 0.0, %v375
        %v377 = vpop.f32.mrb[0].mxu0
        %v378 = vpop.f32.mrb[0].mxu0
        %v379 = vadd.f32 0.0, %v378
        %v380 = vpop.f32.mrb[0].mxu0
        %381 = vmatprep.mubr.bf16.mxu0 0
        %382 = vmatmul.mubr.bf16.gmra.mrb[0].mxu0 %v297
        %v383 = vpop.f32.mrb[0].mxu0
        %v384 = vadd.f32 0.0, %v383
        %v385 = vpop.f32.mrb[0].mxu0
        %v386 = vpop.f32.mrb[0].mxu0
        %v387 = vadd.f32 0.0, %v386
        %v388 = vpop.f32.mrb[0].mxu0
        %389 = vmatprep.mubr.bf16.mxu0 0
        %390 = vmatmul.mubr.bf16.gmra.mrb[0].mxu0 %v300
        %v391 = vpop.f32.mrb[0].mxu0
        %v392 = vadd.f32 0.0, %v391
        %v393 = vpop.f32.mrb[0].mxu0
        %v394 = vpop.f32.mrb[0].mxu0
        %v395 = vadd.f32 0.0, %v394
        %v396 = vpop.f32.mrb[0].mxu0
        %397 = vmatprep.mubr.bf16.mxu0 0
        %398 = vmatmul.mubr.bf16.gmra.mrb[0].mxu0 %v303
        %v399 = vpop.f32.mrb[0].mxu0
        %v400 = vadd.f32 0.0, %v399
        %v401 = vpop.f32.mrb[0].mxu0
        %v402 = vpop.f32.mrb[0].mxu0
        %v403 = vadd.f32 0.0, %v402
        %v404 = vpop.f32.mrb[0].mxu0
        %405 = vmatprep.mubr.bf16.mxu0 0
        %406 = vmatmul.mubr.bf16.gmra.mrb[0].mxu0 %v306
        %v407 = vpop.f32.mrb[0].mxu0
        %v408 = vadd.f32 0.0, %v407
        %v409 = vpop.f32.mrb[0].mxu0
        %v410 = vpop.f32.mrb[0].mxu0
        %v411 = vadd.f32 0.0, %v410
        %v412 = vpop.f32.mrb[0].mxu0
        %413 = vmatprep.mubr.bf16.mxu0 0
        %414 = vmatmul.mubr.bf16.gmra.mrb[0].mxu0 %v309
        %v415 = vpop.f32.mrb[0].mxu0
        %v416 = vadd.f32 0.0, %v415
        %v417 = vpop.f32.mrb[0].mxu0
        %v418 = vpop.f32.mrb[0].mxu0
        %v419 = vadd.f32 0.0, %v418
        %v420 = vpop.f32.mrb[0].mxu0
        %421 = vmatprep.mubr.bf16.mxu0 0
        %422 = vmatmul.mubr.bf16.gmra.mrb[0].mxu0 %v312
        %v423 = vpop.f32.mrb[0].mxu0
        %v424 = vadd.f32 0.0, %v423
        %v425 = vpop.f32.mrb[0].mxu0
        %v426 = vpop.f32.mrb[0].mxu0
        %v427 = vadd.f32 0.0, %v426
        %v428 = vpop.f32.mrb[0].mxu0
        %429 = vmatprep.mubr.bf16.mxu0 0
        %430 = vmatmul.mubr.bf16.gmra.mrb[0].mxu0 %v315
        %v431 = vpop.f32.mrb[0].mxu0
        %v432 = vadd.f32 0.0, %v431
        %v433 = vpop.f32.mrb[0].mxu0
        %v434 = vpop.f32.mrb[0].mxu0
        %v435 = vadd.f32 0.0, %v434
        %v436 = vpop.f32.mrb[0].mxu0
        %437 = vmatprep.mubr.bf16.mxu0 0
        %438 = vmatmul.mubr.bf16.gmra.mrb[0].mxu0 %v318
        %v439 = vpop.f32.mrb[0].mxu0
        %v440 = vadd.f32 0.0, %v439
        %v441 = vpop.f32.mrb[0].mxu0
        %v442 = vpop.f32.mrb[0].mxu0
        %v443 = vadd.f32 0.0, %v442
        %v444 = vpop.f32.mrb[0].mxu0
        %445 = vmatprep.mubr.bf16.mxu0 0
        %446 = vmatmul.mubr.bf16.gmra.mrb[0].mxu0 %v321
        %v447 = vpop.f32.mrb[0].mxu0
        %v448 = vadd.f32 0.0, %v447
        %v449 = vpop.f32.mrb[0].mxu0
        %v450 = vpop.f32.mrb[0].mxu0
        %v451 = vadd.f32 0.0, %v450
        %v452 = vpop.f32.mrb[0].mxu0
        %453 = vmatprep.mubr.bf16.mxu0 0
        %454 = vmatmul.mubr.bf16.gmra.mrb[0].mxu0 %v324
        %v455 = vpop.f32.mrb[0].mxu0
        %v456 = vadd.f32 0.0, %v455
        %v457 = vpop.f32.mrb[0].mxu0
        %v458 = vpop.f32.mrb[0].mxu0
        %v459 = vadd.f32 0.0, %v458
        %v460 = vpop.f32.mrb[0].mxu0
        %461 = vmatprep.mubr.bf16.mxu0 0
        %462 = vmatmul.mubr.bf16.gmra.mrb[0].mxu0 %v327
        %v463 = vpop.f32.mrb[0].mxu0
        %v464 = vadd.f32 0.0, %v463
        %v465 = vpop.f32.mrb[0].mxu0
        %v466 = vpop.f32.mrb[0].mxu0
        %v467 = vadd.f32 0.0, %v466
        %v468 = vpop.f32.mrb[0].mxu0
        %469 = vmatprep.mubr.bf16.mxu0 0
        %470 = vmatmul.mubr.bf16.gmra.mrb[0].mxu0 %v330
        %v471 = vpop.f32.mrb[0].mxu0
        %v472 = vadd.f32 0.0, %v471
        %v473 = vpop.f32.mrb[0].mxu0
        %v474 = vpop.f32.mrb[0].mxu0
        %v475 = vadd.f32 0.0, %v474
        %v476 = vpop.f32.mrb[0].mxu0
        %477 = vmatprep.mubr.bf16.mxu0 0
        %478 = vmatmul.mubr.bf16.gmra.mrb[0].mxu0 %v333
        %v479 = vpop.f32.mrb[0].mxu0
        %v480 = vadd.f32 0.0, %v479
        %v481 = vpop.f32.mrb[0].mxu0
        %v482 = vpop.f32.mrb[0].mxu0
        %v483 = vadd.f32 0.0, %v482
        %v484 = vpop.f32.mrb[0].mxu0
        %485 = vmatprep.mubr.bf16.mxu0 0
        %486 = vmatmul.mubr.bf16.gmra.mrb[0].mxu0 %v336
        %v487 = vpop.f32.mrb[0].mxu0
        %v488 = vadd.f32 0.0, %v487
        %v489 = vpop.f32.mrb[0].mxu0
        %v490 = vpop.f32.mrb[0].mxu0
        %v491 = vadd.f32 0.0, %v490
        %v492 = vpop.f32.mrb[0].mxu0
        %493 = vmatprep.mubr.bf16.mxu0 0
        %494 = vmatmul.mubr.bf16.gmra.mrb[0].mxu0 %v339
        %v495 = vpop.f32.mrb[0].mxu0
        %v496 = vadd.f32 0.0, %v495
        %v497 = vpop.f32.mrb[0].mxu0
        %v498 = vpop.f32.mrb[0].mxu0
        %v499 = vadd.f32 0.0, %v498
        %v500 = vpop.f32.mrb[0].mxu0
        %501 = vdwg.mxu0
        %502 = vst [vmem:[#allocation2] sm:$0xff] %v376
        %503 = vst [vmem:[#allocation2 + $0x8] sm:$0xff] %v379
        %504 = vst [vmem:[#allocation2 + $0x10] sm:$0xff] %v384
        %505 = vst [vmem:[#allocation2 + $0x18] sm:$0xff] %v387
        %506 = vst [vmem:[#allocation2 + $0x20] sm:$0xff] %v392
        %507 = vst [vmem:[#allocation2 + $0x28] sm:$0xff] %v395
        %508 = vst [vmem:[#allocation2 + $0x30] sm:$0xff] %v400
        %509 = vst [vmem:[#allocation2 + $0x38] sm:$0xff] %v403
        %510 = vst [vmem:[#allocation2 + $0x40] sm:$0xff] %v408
        %511 = vst [vmem:[#allocation2 + $0x48] sm:$0xff] %v411
        %512 = vst [vmem:[#allocation2 + $0x50] sm:$0xff] %v416
        %513 = vst [vmem:[#allocation2 + $0x58] sm:$0xff] %v419
        %514 = vst [vmem:[#allocation2 + $0x60] sm:$0xff] %v424
        %515 = vst [vmem:[#allocation2 + $0x68] sm:$0xff] %v427
        %516 = vst [vmem:[#allocation2 + $0x70] sm:$0xff] %v432
        %517 = vst [vmem:[#allocation2 + $0x78] sm:$0xff] %v435
        %518 = vst [vmem:[#allocation2 + $0x80] sm:$0xff] %v440
        %519 = vst [vmem:[#allocation2 + $0x88] sm:$0xff] %v443
        %520 = vst [vmem:[#allocation2 + $0x90] sm:$0xff] %v448
        %521 = vst [vmem:[#allocation2 + $0x98] sm:$0xff] %v451
        %522 = vst [vmem:[#allocation2 + $0xa0] sm:$0xff] %v456
        %523 = vst [vmem:[#allocation2 + $0xa8] sm:$0xff] %v459
        %524 = vst [vmem:[#allocation2 + $0xb0] sm:$0xff] %v464
        %525 = vst [vmem:[#allocation2 + $0xb8] sm:$0xff] %v467
        %526 = vst [vmem:[#allocation2 + $0xc0] sm:$0xff] %v472
        %527 = vst [vmem:[#allocation2 + $0xc8] sm:$0xff] %v475
        %528 = vst [vmem:[#allocation2 + $0xd0] sm:$0xff] %v480
        %529 = vst [vmem:[#allocation2 + $0xd8] sm:$0xff] %v483
        %530 = vst [vmem:[#allocation2 + $0xe0] sm:$0xff] %v488
        %531 = vst [vmem:[#allocation2 + $0xe8] sm:$0xff] %v491
        %532 = vst [vmem:[#allocation2 + $0xf0] sm:$0xff] %v496
        %533 = vst [vmem:[#allocation2 + $0xf8] sm:$0xff] %v499
        %v534 = vld [vmem:[%s4] sm:$0x1]
        %535 = vmatprep.subr.mxu0 0.0
        %536 = vmatpush1.xpose.msra.mxu0 %v376
        %537 = vmatprep.subr.mxu0 0.0
        %538 = vmatpush1.xpose.msra.mxu0 %v379
        %539 = vmatprep.subr.mxu0 0.0
        %540 = vmatpush1.xpose.msra.mxu0 %v384
        %541 = vmatprep.subr.mxu0 0.0
        %542 = vmatpush1.xpose.msra.mxu0 %v387
        %543 = vmatprep.subr.mxu0 0.0
        %544 = vmatpush1.xpose.msra.mxu0 %v392
        %545 = vmatprep.subr.mxu0 0.0
        %546 = vmatpush1.xpose.msra.mxu0 %v395
        %547 = vmatprep.subr.mxu0 0.0
        %548 = vmatpush1.xpose.msra.mxu0 %v400
        %549 = vmatprep.subr.mxu0 0.0
        %550 = vmatpush1.xpose.msra.mxu0 %v403
        %551 = vmatprep.subr.mxu0 0.0
        %552 = vmatpush1.xpose.msra.mxu0 %v408
        %553 = vmatprep.subr.mxu0 0.0
        %554 = vmatpush1.xpose.msra.mxu0 %v411
        %555 = vmatprep.subr.mxu0 0.0
        %556 = vmatpush1.xpose.msra.mxu0 %v416
        %557 = vmatprep.subr.mxu0 0.0
        %558 = vmatpush1.xpose.msra.mxu0 %v419
        %559 = vmatprep.subr.mxu0 0.0
        %560 = vmatpush1.xpose.msra.mxu0 %v424
        %561 = vmatprep.subr.mxu0 0.0
        %562 = vmatpush1.xpose.msra.mxu0 %v427
        %563 = vmatprep.subr.mxu0 0.0
        %564 = vmatpush1.xpose.msra.mxu0 %v432
        %565 = vmatprep.subr.mxu0 0.0
        %566 = vmatpush1.xpose.msra.mxu0 %v435
        %567 = vmatprep.subr.mxu0 0.0
        %568 = vmatpush1.xpose.msra.mxu0 %v440
        %569 = vmatprep.subr.mxu0 0.0
        %570 = vmatpush1.xpose.msra.mxu0 %v443
        %571 = vmatprep.subr.mxu0 0.0
        %572 = vmatpush1.xpose.msra.mxu0 %v448
        %573 = vmatprep.subr.mxu0 0.0
        %574 = vmatpush1.xpose.msra.mxu0 %v451
        %575 = vmatprep.subr.mxu0 0.0
        %576 = vmatpush1.xpose.msra.mxu0 %v456
        %577 = vmatprep.subr.mxu0 0.0
        %578 = vmatpush1.xpose.msra.mxu0 %v459
        %579 = vmatprep.subr.mxu0 0.0
        %580 = vmatpush1.xpose.msra.mxu0 %v464
        %581 = vmatprep.subr.mxu0 0.0
        %582 = vmatpush1.xpose.msra.mxu0 %v467
        %583 = vmatprep.subr.mxu0 0.0
        %584 = vmatpush1.xpose.msra.mxu0 %v472
        %585 = vmatprep.subr.mxu0 0.0
        %586 = vmatpush1.xpose.msra.mxu0 %v475
        %587 = vmatprep.subr.mxu0 0.0
        %588 = vmatpush1.xpose.msra.mxu0 %v480
        %589 = vmatprep.subr.mxu0 0.0
        %590 = vmatpush1.xpose.msra.mxu0 %v483
        %591 = vmatprep.subr.mxu0 0.0
        %592 = vmatpush1.xpose.msra.mxu0 %v488
        %593 = vmatprep.subr.mxu0 0.0
        %594 = vmatpush1.xpose.msra.mxu0 %v491
        %595 = vmatprep.subr.mxu0 0.0
        %596 = vmatpush1.xpose.msra.mxu0 %v496
        %597 = vmatprep.subr.mxu0 0.0
        %598 = vmatpush1.xpose.msra.mxu0 %v499
        %599 = vmatprep.mubr.f32.mxu0 0.0
        %600 = vmatmul.mubr.f32.gmra.mrb[0].mxu0 %v534
        %v601 = vpop.f32.mrb[0].mxu0
        %v602 = vadd.f32 0.0, %v601
        %v603 = vpop.f32.mrb[0].mxu0
        %v604 = vadd.f32 0.0, %v603
        %605 = vdwg.mxu0
        %s606 = smul.u32 %s19, 128
        %s607 = scalar_lea.vmem [#allocation2], %s606
        %v608 = vld [vmem:[%s607] sm:$0xff]
        %v609 = vld [vmem:[%s607 + $0x8] sm:$0xff]
        %v610 = vld [vmem:[%s607 + $0x10] sm:$0xff]
        %v611 = vld [vmem:[%s607 + $0x18] sm:$0xff]
        %v612 = vld [vmem:[%s607 + $0x20] sm:$0xff]
        %v613 = vld [vmem:[%s607 + $0x28] sm:$0xff]
        %v614 = vld [vmem:[%s607 + $0x30] sm:$0xff]
        %v615 = vld [vmem:[%s607 + $0x38] sm:$0xff]
        %v616 = vld [vmem:[%s607 + $0x40] sm:$0xff]
        %v617 = vld [vmem:[%s607 + $0x48] sm:$0xff]
        %v618 = vld [vmem:[%s607 + $0x50] sm:$0xff]
        %v619 = vld [vmem:[%s607 + $0x58] sm:$0xff]
        %v620 = vld [vmem:[%s607 + $0x60] sm:$0xff]
        %v621 = vld [vmem:[%s607 + $0x68] sm:$0xff]
        %v622 = vld [vmem:[%s607 + $0x70] sm:$0xff]
        %v623 = vld [vmem:[%s607 + $0x78] sm:$0xff]
        %v624 = vld [vmem:[%s3] sm:$0xff]
        %v625 = vld [vmem:[%s3 + $0x8] sm:$0xff]
        %v626 = vld [vmem:[%s3 + $0x10] sm:$0xff]
        %v627 = vld [vmem:[%s3 + $0x18] sm:$0xff]
        %v628 = vld [vmem:[%s3 + $0x20] sm:$0xff]
        %v629 = vld [vmem:[%s3 + $0x28] sm:$0xff]
        %v630 = vld [vmem:[%s3 + $0x30] sm:$0xff]
        %v631 = vld [vmem:[%s3 + $0x38] sm:$0xff]
        %v632 = vld [vmem:[%s3 + $0x40] sm:$0xff]
        %v633 = vld [vmem:[%s3 + $0x48] sm:$0xff]
        %v634 = vld [vmem:[%s3 + $0x50] sm:$0xff]
        %v635 = vld [vmem:[%s3 + $0x58] sm:$0xff]
        %v636 = vld [vmem:[%s3 + $0x60] sm:$0xff]
        %v637 = vld [vmem:[%s3 + $0x68] sm:$0xff]
        %v638 = vld [vmem:[%s3 + $0x70] sm:$0xff]
        %v639 = vld [vmem:[%s3 + $0x78] sm:$0xff]
        %640 = vmatprep.subr.mxu0 0.0
        %641 = vmatpush1.msra.mxu0 %v624
        %642 = vmatprep.subr.mxu0 0.0
        %643 = vmatpush1.msra.mxu0 %v625
        %644 = vmatprep.subr.mxu0 0.0
        %645 = vmatpush1.msra.mxu0 %v626
        %646 = vmatprep.subr.mxu0 0.0
        %647 = vmatpush1.msra.mxu0 %v627
        %648 = vmatprep.subr.mxu0 0.0
        %649 = vmatpush1.msra.mxu0 %v628
        %650 = vmatprep.subr.mxu0 0.0
        %651 = vmatpush1.msra.mxu0 %v629
        %652 = vmatprep.subr.mxu0 0.0
        %653 = vmatpush1.msra.mxu0 %v630
        %654 = vmatprep.subr.mxu0 0.0
        %655 = vmatpush1.msra.mxu0 %v631
        %656 = vmatprep.subr.mxu0 0.0
        %657 = vmatpush1.msra.mxu0 %v632
        %658 = vmatprep.subr.mxu0 0.0
        %659 = vmatpush1.msra.mxu0 %v633
        %660 = vmatprep.subr.mxu0 0.0
        %661 = vmatpush1.msra.mxu0 %v634
        %662 = vmatprep.subr.mxu0 0.0
        %663 = vmatpush1.msra.mxu0 %v635
        %664 = vmatprep.subr.mxu0 0.0
        %665 = vmatpush1.msra.mxu0 %v636
        %666 = vmatprep.subr.mxu0 0.0
        %667 = vmatpush1.msra.mxu0 %v637
        %668 = vmatprep.subr.mxu0 0.0
        %669 = vmatpush1.msra.mxu0 %v638
        %670 = vmatprep.subr.mxu0 0.0
        %671 = vmatpush1.msra.mxu0 %v639
        %672 = vmatprep.subr.mxu0 0.0
        %673 = vmatpush1.msra.mxu0 0.0
        %674 = vmatprep.subr.mxu0 0.0
        %675 = vmatpush1.msra.mxu0 0.0
        %676 = vmatprep.subr.mxu0 0.0
        %677 = vmatpush1.msra.mxu0 0.0
        %678 = vmatprep.subr.mxu0 0.0
        %679 = vmatpush1.msra.mxu0 0.0
        %680 = vmatprep.subr.mxu0 0.0
        %681 = vmatpush1.msra.mxu0 0.0
        %682 = vmatprep.subr.mxu0 0.0
        %683 = vmatpush1.msra.mxu0 0.0
        %684 = vmatprep.subr.mxu0 0.0
        %685 = vmatpush1.msra.mxu0 0.0
        %686 = vmatprep.subr.mxu0 0.0
        %687 = vmatpush1.msra.mxu0 0.0
        %688 = vmatprep.subr.mxu0 0.0
        %689 = vmatpush1.msra.mxu0 0.0
        %690 = vmatprep.subr.mxu0 0.0
        %691 = vmatpush1.msra.mxu0 0.0
        %692 = vmatprep.subr.mxu0 0.0
        %693 = vmatpush1.msra.mxu0 0.0
        %694 = vmatprep.subr.mxu0 0.0
        %695 = vmatpush1.msra.mxu0 0.0
        %696 = vmatprep.subr.mxu0 0.0
        %697 = vmatpush1.msra.mxu0 0.0
        %698 = vmatprep.subr.mxu0 0.0
        %699 = vmatpush1.msra.mxu0 0.0
        %700 = vmatprep.subr.mxu0 0.0
        %701 = vmatpush1.msra.mxu0 0.0
        %702 = vmatprep.subr.mxu0 0.0
        %703 = vmatpush1.msra.mxu0 0.0
        %704 = vmatprep.mubr.f32.mxu0 0.0
        %705 = vmatmul.mubr.f32.gmra.mrb[0].mxu0 %v608
        %v706 = vpop.f32.mrb[0].mxu0
        %v707 = vadd.f32 0.0, %v706
        %v708 = vpop.f32.mrb[0].mxu0
        %709 = vmatprep.mubr.f32.mxu0 0.0
        %710 = vmatmul.mubr.f32.gmra.mrb[0].mxu0 %v609
        %v711 = vpop.f32.mrb[0].mxu0
        %v712 = vadd.f32 0.0, %v711
        %v713 = vpop.f32.mrb[0].mxu0
        %714 = vmatprep.mubr.f32.mxu0 0.0
        %715 = vmatmul.mubr.f32.gmra.mrb[0].mxu0 %v610
        %v716 = vpop.f32.mrb[0].mxu0
        %v717 = vadd.f32 0.0, %v716
        %v718 = vpop.f32.mrb[0].mxu0
        %719 = vmatprep.mubr.f32.mxu0 0.0
        %720 = vmatmul.mubr.f32.gmra.mrb[0].mxu0 %v611
        %v721 = vpop.f32.mrb[0].mxu0
        %v722 = vadd.f32 0.0, %v721
        %v723 = vpop.f32.mrb[0].mxu0
        %724 = vmatprep.mubr.f32.mxu0 0.0
        %725 = vmatmul.mubr.f32.gmra.mrb[0].mxu0 %v612
        %v726 = vpop.f32.mrb[0].mxu0
        %v727 = vadd.f32 0.0, %v726
        %v728 = vpop.f32.mrb[0].mxu0
        %729 = vmatprep.mubr.f32.mxu0 0.0
        %730 = vmatmul.mubr.f32.gmra.mrb[0].mxu0 %v613
        %v731 = vpop.f32.mrb[0].mxu0
        %v732 = vadd.f32 0.0, %v731
        %v733 = vpop.f32.mrb[0].mxu0
        %734 = vmatprep.mubr.f32.mxu0 0.0
        %735 = vmatmul.mubr.f32.gmra.mrb[0].mxu0 %v614
        %v736 = vpop.f32.mrb[0].mxu0
        %v737 = vadd.f32 0.0, %v736
        %v738 = vpop.f32.mrb[0].mxu0
        %739 = vmatprep.mubr.f32.mxu0 0.0
        %740 = vmatmul.mubr.f32.gmra.mrb[0].mxu0 %v615
        %v741 = vpop.f32.mrb[0].mxu0
        %v742 = vadd.f32 0.0, %v741
        %v743 = vpop.f32.mrb[0].mxu0
        %744 = vmatprep.mubr.f32.mxu0 0.0
        %745 = vmatmul.mubr.f32.gmra.mrb[0].mxu0 %v616
        %v746 = vpop.f32.mrb[0].mxu0
        %v747 = vadd.f32 0.0, %v746
        %v748 = vpop.f32.mrb[0].mxu0
        %749 = vmatprep.mubr.f32.mxu0 0.0
        %750 = vmatmul.mubr.f32.gmra.mrb[0].mxu0 %v617
        %v751 = vpop.f32.mrb[0].mxu0
        %v752 = vadd.f32 0.0, %v751
        %v753 = vpop.f32.mrb[0].mxu0
        %754 = vmatprep.mubr.f32.mxu0 0.0
        %755 = vmatmul.mubr.f32.gmra.mrb[0].mxu0 %v618
        %v756 = vpop.f32.mrb[0].mxu0
        %v757 = vadd.f32 0.0, %v756
        %v758 = vpop.f32.mrb[0].mxu0
        %759 = vmatprep.mubr.f32.mxu0 0.0
        %760 = vmatmul.mubr.f32.gmra.mrb[0].mxu0 %v619
        %v761 = vpop.f32.mrb[0].mxu0
        %v762 = vadd.f32 0.0, %v761
        %v763 = vpop.f32.mrb[0].mxu0
        %764 = vmatprep.mubr.f32.mxu0 0.0
        %765 = vmatmul.mubr.f32.gmra.mrb[0].mxu0 %v620
        %v766 = vpop.f32.mrb[0].mxu0
        %v767 = vadd.f32 0.0, %v766
        %v768 = vpop.f32.mrb[0].mxu0
        %769 = vmatprep.mubr.f32.mxu0 0.0
        %770 = vmatmul.mubr.f32.gmra.mrb[0].mxu0 %v621
        %v771 = vpop.f32.mrb[0].mxu0
        %v772 = vadd.f32 0.0, %v771
        %v773 = vpop.f32.mrb[0].mxu0
        %774 = vmatprep.mubr.f32.mxu0 0.0
        %775 = vmatmul.mubr.f32.gmra.mrb[0].mxu0 %v622
        %v776 = vpop.f32.mrb[0].mxu0
        %v777 = vadd.f32 0.0, %v776
        %v778 = vpop.f32.mrb[0].mxu0
        %779 = vmatprep.mubr.f32.mxu0 0.0
        %780 = vmatmul.mubr.f32.gmra.mrb[0].mxu0 %v623
        %v781 = vpop.f32.mrb[0].mxu0
        %v782 = vadd.f32 0.0, %v781
        %v783 = vpop.f32.mrb[0].mxu0
        %784 = vdwg.mxu0
        %786 = vset.pattern.permute.xlu0 0
        %787 = vperm.xlu0 %786, %v707
        %v788 = vpop.permute.xlu0 %787
        %791 = vset.pattern.permute.xlu0 0
        %792 = vperm.xlu0 %791, %v712
        %v793 = vpop.permute.xlu0 %792
        %796 = vset.pattern.permute.xlu0 0
        %797 = vperm.xlu0 %796, %v717
        %v798 = vpop.permute.xlu0 %797
        %801 = vset.pattern.permute.xlu0 0
        %802 = vperm.xlu0 %801, %v722
        %v803 = vpop.permute.xlu0 %802
        %806 = vset.pattern.permute.xlu0 0
        %807 = vperm.xlu0 %806, %v727
        %v808 = vpop.permute.xlu0 %807
        %811 = vset.pattern.permute.xlu0 0
        %812 = vperm.xlu0 %811, %v732
        %v813 = vpop.permute.xlu0 %812
        %816 = vset.pattern.permute.xlu0 0
        %817 = vperm.xlu0 %816, %v737
        %v818 = vpop.permute.xlu0 %817
        %821 = vset.pattern.permute.xlu0 0
        %822 = vperm.xlu0 %821, %v742
        %v823 = vpop.permute.xlu0 %822
        %826 = vset.pattern.permute.xlu0 0
        %827 = vperm.xlu0 %826, %v747
        %v828 = vpop.permute.xlu0 %827
        %831 = vset.pattern.permute.xlu0 0
        %832 = vperm.xlu0 %831, %v752
        %v833 = vpop.permute.xlu0 %832
        %836 = vset.pattern.permute.xlu0 0
        %837 = vperm.xlu0 %836, %v757
        %v838 = vpop.permute.xlu0 %837
        %841 = vset.pattern.permute.xlu0 0
        %842 = vperm.xlu0 %841, %v762
        %v843 = vpop.permute.xlu0 %842
        %846 = vset.pattern.permute.xlu0 0
        %847 = vperm.xlu0 %846, %v767
        %v848 = vpop.permute.xlu0 %847
        %851 = vset.pattern.permute.xlu0 0
        %852 = vperm.xlu0 %851, %v772
        %v853 = vpop.permute.xlu0 %852
        %856 = vset.pattern.permute.xlu0 0
        %857 = vperm.xlu0 %856, %v777
        %v858 = vpop.permute.xlu0 %857
        %861 = vset.pattern.permute.xlu0 0
        %862 = vperm.xlu0 %861, %v782
        %v863 = vpop.permute.xlu0 %862
        %v865 = vlaneseq
        %v866 = vshrl.u32 %v865, 7
        %v867 = vsub.s32 0, %v866
        %v868 = vrot.slane %v602, %v867
        %v869 = vlaneseq
        %v870 = vshrl.u32 %v869, 7
        %v871 = vsub.s32 0, %v870
        %v872 = vrot.slane %v604, %v871
        %v873 = vadd.f32 %v788, %v868
        %v874 = vadd.f32 %v788, %v872
        %v875 = vadd.f32 %v793, %v868
        %v876 = vadd.f32 %v793, %v872
        %v877 = vadd.f32 %v798, %v868
        %v878 = vadd.f32 %v798, %v872
        %v879 = vadd.f32 %v803, %v868
        %v880 = vadd.f32 %v803, %v872
        %v881 = vadd.f32 %v808, %v868
        %v882 = vadd.f32 %v808, %v872
        %v883 = vadd.f32 %v813, %v868
        %v884 = vadd.f32 %v813, %v872
        %v885 = vadd.f32 %v818, %v868
        %v886 = vadd.f32 %v818, %v872
        %v887 = vadd.f32 %v823, %v868
        %v888 = vadd.f32 %v823, %v872
        %v889 = vadd.f32 %v828, %v868
        %v890 = vadd.f32 %v828, %v872
        %v891 = vadd.f32 %v833, %v868
        %v892 = vadd.f32 %v833, %v872
        %v893 = vadd.f32 %v838, %v868
        %v894 = vadd.f32 %v838, %v872
        %v895 = vadd.f32 %v843, %v868
        %v896 = vadd.f32 %v843, %v872
        %v897 = vadd.f32 %v848, %v868
        %v898 = vadd.f32 %v848, %v872
        %v899 = vadd.f32 %v853, %v868
        %v900 = vadd.f32 %v853, %v872
        %v901 = vadd.f32 %v858, %v868
        %v902 = vadd.f32 %v858, %v872
        %v903 = vadd.f32 %v863, %v868
        %v904 = vadd.f32 %v863, %v872
        %vm905 = vcmp.gt.f32.partialorder %v873, 0.0
        %vm906 = vcmp.gt.f32.partialorder %v874, 0.0
        %vm907 = vcmp.gt.f32.partialorder %v875, 0.0
        %vm908 = vcmp.gt.f32.partialorder %v876, 0.0
        %vm909 = vcmp.gt.f32.partialorder %v877, 0.0
        %vm910 = vcmp.gt.f32.partialorder %v878, 0.0
        %vm911 = vcmp.gt.f32.partialorder %v879, 0.0
        %vm912 = vcmp.gt.f32.partialorder %v880, 0.0
        %vm913 = vcmp.gt.f32.partialorder %v881, 0.0
        %vm914 = vcmp.gt.f32.partialorder %v882, 0.0
        %vm915 = vcmp.gt.f32.partialorder %v883, 0.0
        %vm916 = vcmp.gt.f32.partialorder %v884, 0.0
        %vm917 = vcmp.gt.f32.partialorder %v885, 0.0
        %vm918 = vcmp.gt.f32.partialorder %v886, 0.0
        %vm919 = vcmp.gt.f32.partialorder %v887, 0.0
        %vm920 = vcmp.gt.f32.partialorder %v888, 0.0
        %vm921 = vcmp.gt.f32.partialorder %v889, 0.0
        %vm922 = vcmp.gt.f32.partialorder %v890, 0.0
        %vm923 = vcmp.gt.f32.partialorder %v891, 0.0
        %vm924 = vcmp.gt.f32.partialorder %v892, 0.0
        %vm925 = vcmp.gt.f32.partialorder %v893, 0.0
        %vm926 = vcmp.gt.f32.partialorder %v894, 0.0
        %vm927 = vcmp.gt.f32.partialorder %v895, 0.0
        %vm928 = vcmp.gt.f32.partialorder %v896, 0.0
        %vm929 = vcmp.gt.f32.partialorder %v897, 0.0
        %vm930 = vcmp.gt.f32.partialorder %v898, 0.0
        %vm931 = vcmp.gt.f32.partialorder %v899, 0.0
        %vm932 = vcmp.gt.f32.partialorder %v900, 0.0
        %vm933 = vcmp.gt.f32.partialorder %v901, 0.0
        %vm934 = vcmp.gt.f32.partialorder %v902, 0.0
        %vm935 = vcmp.gt.f32.partialorder %v903, 0.0
        %vm936 = vcmp.gt.f32.partialorder %v904, 0.0
        %v937 = vmul.f32 %v873, 0.2
        %v938 = vmul.f32 %v874, 0.2
        %v939 = vmul.f32 %v875, 0.2
        %v940 = vmul.f32 %v876, 0.2
        %v941 = vmul.f32 %v877, 0.2
        %v942 = vmul.f32 %v878, 0.2
        %v943 = vmul.f32 %v879, 0.2
        %v944 = vmul.f32 %v880, 0.2
        %v945 = vmul.f32 %v881, 0.2
        %v946 = vmul.f32 %v882, 0.2
        %v947 = vmul.f32 %v883, 0.2
        %v948 = vmul.f32 %v884, 0.2
        %v949 = vmul.f32 %v885, 0.2
        %v950 = vmul.f32 %v886, 0.2
        %v951 = vmul.f32 %v887, 0.2
        %v952 = vmul.f32 %v888, 0.2
        %v953 = vmul.f32 %v889, 0.2
        %v954 = vmul.f32 %v890, 0.2
        %v955 = vmul.f32 %v891, 0.2
        %v956 = vmul.f32 %v892, 0.2
        %v957 = vmul.f32 %v893, 0.2
        %v958 = vmul.f32 %v894, 0.2
        %v959 = vmul.f32 %v895, 0.2
        %v960 = vmul.f32 %v896, 0.2
        %v961 = vmul.f32 %v897, 0.2
        %v962 = vmul.f32 %v898, 0.2
        %v963 = vmul.f32 %v899, 0.2
        %v964 = vmul.f32 %v900, 0.2
        %v965 = vmul.f32 %v901, 0.2
        %v966 = vmul.f32 %v902, 0.2
        %v967 = vmul.f32 %v903, 0.2
        %v968 = vmul.f32 %v904, 0.2
        %v969 = vsel %vm905, %v873, %v937
        %v970 = vsel %vm906, %v874, %v938
        %v971 = vsel %vm907, %v875, %v939
        %v972 = vsel %vm908, %v876, %v940
        %v973 = vsel %vm909, %v877, %v941
        %v974 = vsel %vm910, %v878, %v942
        %v975 = vsel %vm911, %v879, %v943
        %v976 = vsel %vm912, %v880, %v944
        %v977 = vsel %vm913, %v881, %v945
        %v978 = vsel %vm914, %v882, %v946
        %v979 = vsel %vm915, %v883, %v947
        %v980 = vsel %vm916, %v884, %v948
        %v981 = vsel %vm917, %v885, %v949
        %v982 = vsel %vm918, %v886, %v950
        %v983 = vsel %vm919, %v887, %v951
        %v984 = vsel %vm920, %v888, %v952
        %v985 = vsel %vm921, %v889, %v953
        %v986 = vsel %vm922, %v890, %v954
        %v987 = vsel %vm923, %v891, %v955
        %v988 = vsel %vm924, %v892, %v956
        %v989 = vsel %vm925, %v893, %v957
        %v990 = vsel %vm926, %v894, %v958
        %v991 = vsel %vm927, %v895, %v959
        %v992 = vsel %vm928, %v896, %v960
        %v993 = vsel %vm929, %v897, %v961
        %v994 = vsel %vm930, %v898, %v962
        %v995 = vsel %vm931, %v899, %v963
        %v996 = vsel %vm932, %v900, %v964
        %v997 = vsel %vm933, %v901, %v965
        %v998 = vsel %vm934, %v902, %v966
        %v999 = vsel %vm935, %v903, %v967
        %v1000 = vsel %vm936, %v904, %v968
        %v1001 = vld [vmem:[%s226] sm:$0xff]
        %v1002 = vld [vmem:[%s226 + $0x8] sm:$0xff]
        %v1003 = vld [vmem:[%s226 + $0x10] sm:$0xff]
        %v1004 = vld [vmem:[%s226 + $0x18] sm:$0xff]
        %v1005 = vld [vmem:[%s226 + $0x20] sm:$0xff]
        %v1006 = vld [vmem:[%s226 + $0x28] sm:$0xff]
        %v1007 = vld [vmem:[%s226 + $0x30] sm:$0xff]
        %v1008 = vld [vmem:[%s226 + $0x38] sm:$0xff]
        %v1009 = vld [vmem:[%s226 + $0x40] sm:$0xff]
        %v1010 = vld [vmem:[%s226 + $0x48] sm:$0xff]
        %v1011 = vld [vmem:[%s226 + $0x50] sm:$0xff]
        %v1012 = vld [vmem:[%s226 + $0x58] sm:$0xff]
        %v1013 = vld [vmem:[%s226 + $0x60] sm:$0xff]
        %v1014 = vld [vmem:[%s226 + $0x68] sm:$0xff]
        %v1015 = vld [vmem:[%s226 + $0x70] sm:$0xff]
        %v1016 = vld [vmem:[%s226 + $0x78] sm:$0xff]
        %vm1017 = vcmp.gt.bf16.partialorder %v1001, 0
        %vm1018 = vcmp.gt.bf16.partialorder %v1002, 0
        %vm1019 = vcmp.gt.bf16.partialorder %v1003, 0
        %vm1020 = vcmp.gt.bf16.partialorder %v1004, 0
        %vm1021 = vcmp.gt.bf16.partialorder %v1005, 0
        %vm1022 = vcmp.gt.bf16.partialorder %v1006, 0
        %vm1023 = vcmp.gt.bf16.partialorder %v1007, 0
        %vm1024 = vcmp.gt.bf16.partialorder %v1008, 0
        %vm1025 = vcmp.gt.bf16.partialorder %v1009, 0
        %vm1026 = vcmp.gt.bf16.partialorder %v1010, 0
        %vm1027 = vcmp.gt.bf16.partialorder %v1011, 0
        %vm1028 = vcmp.gt.bf16.partialorder %v1012, 0
        %vm1029 = vcmp.gt.bf16.partialorder %v1013, 0
        %vm1030 = vcmp.gt.bf16.partialorder %v1014, 0
        %vm1031 = vcmp.gt.bf16.partialorder %v1015, 0
        %vm1032 = vcmp.gt.bf16.partialorder %v1016, 0
        %v1033 = vsel %vm1017, 65537, 0
        %v1034 = vsel %vm1018, 65537, 0
        %v1035 = vsel %vm1019, 65537, 0
        %v1036 = vsel %vm1020, 65537, 0
        %v1037 = vsel %vm1021, 65537, 0
        %v1038 = vsel %vm1022, 65537, 0
        %v1039 = vsel %vm1023, 65537, 0
        %v1040 = vsel %vm1024, 65537, 0
        %v1041 = vsel %vm1025, 65537, 0
        %v1042 = vsel %vm1026, 65537, 0
        %v1043 = vsel %vm1027, 65537, 0
        %v1044 = vsel %vm1028, 65537, 0
        %v1045 = vsel %vm1029, 65537, 0
        %v1046 = vsel %vm1030, 65537, 0
        %v1047 = vsel %vm1031, 65537, 0
        %v1048 = vsel %vm1032, 65537, 0
        %v1049 = vunpack.c.l.b16 %v1033
        %v1050 = vunpack.c.h.b16 %v1033
        %v1051 = vunpack.c.l.b16 %v1034
        %v1052 = vunpack.c.h.b16 %v1034
        %v1053 = vunpack.c.l.b16 %v1035
        %v1054 = vunpack.c.h.b16 %v1035
        %v1055 = vunpack.c.l.b16 %v1036
        %v1056 = vunpack.c.h.b16 %v1036
        %v1057 = vunpack.c.l.b16 %v1037
        %v1058 = vunpack.c.h.b16 %v1037
        %v1059 = vunpack.c.l.b16 %v1038
        %v1060 = vunpack.c.h.b16 %v1038
        %v1061 = vunpack.c.l.b16 %v1039
        %v1062 = vunpack.c.h.b16 %v1039
        %v1063 = vunpack.c.l.b16 %v1040
        %v1064 = vunpack.c.h.b16 %v1040
        %v1065 = vunpack.c.l.b16 %v1041
        %v1066 = vunpack.c.h.b16 %v1041
        %v1067 = vunpack.c.l.b16 %v1042
        %v1068 = vunpack.c.h.b16 %v1042
        %v1069 = vunpack.c.l.b16 %v1043
        %v1070 = vunpack.c.h.b16 %v1043
        %v1071 = vunpack.c.l.b16 %v1044
        %v1072 = vunpack.c.h.b16 %v1044
        %v1073 = vunpack.c.l.b16 %v1045
        %v1074 = vunpack.c.h.b16 %v1045
        %v1075 = vunpack.c.l.b16 %v1046
        %v1076 = vunpack.c.h.b16 %v1046
        %v1077 = vunpack.c.l.b16 %v1047
        %v1078 = vunpack.c.h.b16 %v1047
        %v1079 = vunpack.c.l.b16 %v1048
        %v1080 = vunpack.c.h.b16 %v1048
        %vm1081 = vcmp.ne.s32.totalorder %v1049, 0
        %vm1082 = vcmp.ne.s32.totalorder %v1050, 0
        %vm1083 = vcmp.ne.s32.totalorder %v1051, 0
        %vm1084 = vcmp.ne.s32.totalorder %v1052, 0
        %vm1085 = vcmp.ne.s32.totalorder %v1053, 0
        %vm1086 = vcmp.ne.s32.totalorder %v1054, 0
        %vm1087 = vcmp.ne.s32.totalorder %v1055, 0
        %vm1088 = vcmp.ne.s32.totalorder %v1056, 0
        %vm1089 = vcmp.ne.s32.totalorder %v1057, 0
        %vm1090 = vcmp.ne.s32.totalorder %v1058, 0
        %vm1091 = vcmp.ne.s32.totalorder %v1059, 0
        %vm1092 = vcmp.ne.s32.totalorder %v1060, 0
        %vm1093 = vcmp.ne.s32.totalorder %v1061, 0
        %vm1094 = vcmp.ne.s32.totalorder %v1062, 0
        %vm1095 = vcmp.ne.s32.totalorder %v1063, 0
        %vm1096 = vcmp.ne.s32.totalorder %v1064, 0
        %vm1097 = vcmp.ne.s32.totalorder %v1065, 0
        %vm1098 = vcmp.ne.s32.totalorder %v1066, 0
        %vm1099 = vcmp.ne.s32.totalorder %v1067, 0
        %vm1100 = vcmp.ne.s32.totalorder %v1068, 0
        %vm1101 = vcmp.ne.s32.totalorder %v1069, 0
        %vm1102 = vcmp.ne.s32.totalorder %v1070, 0
        %vm1103 = vcmp.ne.s32.totalorder %v1071, 0
        %vm1104 = vcmp.ne.s32.totalorder %v1072, 0
        %vm1105 = vcmp.ne.s32.totalorder %v1073, 0
        %vm1106 = vcmp.ne.s32.totalorder %v1074, 0
        %vm1107 = vcmp.ne.s32.totalorder %v1075, 0
        %vm1108 = vcmp.ne.s32.totalorder %v1076, 0
        %vm1109 = vcmp.ne.s32.totalorder %v1077, 0
        %vm1110 = vcmp.ne.s32.totalorder %v1078, 0
        %vm1111 = vcmp.ne.s32.totalorder %v1079, 0
        %vm1112 = vcmp.ne.s32.totalorder %v1080, 0
        %v1113 = vsel %vm1081, %v969, -9e+15
        %v1114 = vsel %vm1082, %v970, -9e+15
        %v1115 = vsel %vm1083, %v971, -9e+15
        %v1116 = vsel %vm1084, %v972, -9e+15
        %v1117 = vsel %vm1085, %v973, -9e+15
        %v1118 = vsel %vm1086, %v974, -9e+15
        %v1119 = vsel %vm1087, %v975, -9e+15
        %v1120 = vsel %vm1088, %v976, -9e+15
        %v1121 = vsel %vm1089, %v977, -9e+15
        %v1122 = vsel %vm1090, %v978, -9e+15
        %v1123 = vsel %vm1091, %v979, -9e+15
        %v1124 = vsel %vm1092, %v980, -9e+15
        %v1125 = vsel %vm1093, %v981, -9e+15
        %v1126 = vsel %vm1094, %v982, -9e+15
        %v1127 = vsel %vm1095, %v983, -9e+15
        %v1128 = vsel %vm1096, %v984, -9e+15
        %v1129 = vsel %vm1097, %v985, -9e+15
        %v1130 = vsel %vm1098, %v986, -9e+15
        %v1131 = vsel %vm1099, %v987, -9e+15
        %v1132 = vsel %vm1100, %v988, -9e+15
        %v1133 = vsel %vm1101, %v989, -9e+15
        %v1134 = vsel %vm1102, %v990, -9e+15
        %v1135 = vsel %vm1103, %v991, -9e+15
        %v1136 = vsel %vm1104, %v992, -9e+15
        %v1137 = vsel %vm1105, %v993, -9e+15
        %v1138 = vsel %vm1106, %v994, -9e+15
        %v1139 = vsel %vm1107, %v995, -9e+15
        %v1140 = vsel %vm1108, %v996, -9e+15
        %v1141 = vsel %vm1109, %v997, -9e+15
        %v1142 = vsel %vm1110, %v998, -9e+15
        %v1143 = vsel %vm1111, %v999, -9e+15
        %v1144 = vsel %vm1112, %v1000, -9e+15
        %v1145 = vmax.f32 %v1113, %v1114
        %1146 = vmax.xlane.f32.xlu0 %v1145
        %v1147 = vpop.xlane.xlu0 %1146
        %v1148 = vmax.f32 %v1115, %v1116
        %1149 = vmax.xlane.f32.xlu0 %v1148
        %v1150 = vpop.xlane.xlu0 %1149
        %v1151 = vmax.f32 %v1117, %v1118
        %1152 = vmax.xlane.f32.xlu0 %v1151
        %v1153 = vpop.xlane.xlu0 %1152
        %v1154 = vmax.f32 %v1119, %v1120
        %1155 = vmax.xlane.f32.xlu0 %v1154
        %v1156 = vpop.xlane.xlu0 %1155
        %v1157 = vmax.f32 %v1121, %v1122
        %1158 = vmax.xlane.f32.xlu0 %v1157
        %v1159 = vpop.xlane.xlu0 %1158
        %v1160 = vmax.f32 %v1123, %v1124
        %1161 = vmax.xlane.f32.xlu0 %v1160
        %v1162 = vpop.xlane.xlu0 %1161
        %v1163 = vmax.f32 %v1125, %v1126
        %1164 = vmax.xlane.f32.xlu0 %v1163
        %v1165 = vpop.xlane.xlu0 %1164
        %v1166 = vmax.f32 %v1127, %v1128
        %1167 = vmax.xlane.f32.xlu0 %v1166
        %v1168 = vpop.xlane.xlu0 %1167
        %v1169 = vmax.f32 %v1129, %v1130
        %1170 = vmax.xlane.f32.xlu0 %v1169
        %v1171 = vpop.xlane.xlu0 %1170
        %v1172 = vmax.f32 %v1131, %v1132
        %1173 = vmax.xlane.f32.xlu0 %v1172
        %v1174 = vpop.xlane.xlu0 %1173
        %v1175 = vmax.f32 %v1133, %v1134
        %1176 = vmax.xlane.f32.xlu0 %v1175
        %v1177 = vpop.xlane.xlu0 %1176
        %v1178 = vmax.f32 %v1135, %v1136
        %1179 = vmax.xlane.f32.xlu0 %v1178
        %v1180 = vpop.xlane.xlu0 %1179
        %v1181 = vmax.f32 %v1137, %v1138
        %1182 = vmax.xlane.f32.xlu0 %v1181
        %v1183 = vpop.xlane.xlu0 %1182
        %v1184 = vmax.f32 %v1139, %v1140
        %1185 = vmax.xlane.f32.xlu0 %v1184
        %v1186 = vpop.xlane.xlu0 %1185
        %v1187 = vmax.f32 %v1141, %v1142
        %1188 = vmax.xlane.f32.xlu0 %v1187
        %v1189 = vpop.xlane.xlu0 %1188
        %v1190 = vmax.f32 %v1143, %v1144
        %1191 = vmax.xlane.f32.xlu0 %v1190
        %v1192 = vpop.xlane.xlu0 %1191
        %v1193 = vsub.f32 %v1113, %v1147
        %v1194 = vsub.f32 %v1114, %v1147
        %v1195 = vsub.f32 %v1115, %v1150
        %v1196 = vsub.f32 %v1116, %v1150
        %v1197 = vsub.f32 %v1117, %v1153
        %v1198 = vsub.f32 %v1118, %v1153
        %v1199 = vsub.f32 %v1119, %v1156
        %v1200 = vsub.f32 %v1120, %v1156
        %v1201 = vsub.f32 %v1121, %v1159
        %v1202 = vsub.f32 %v1122, %v1159
        %v1203 = vsub.f32 %v1123, %v1162
        %v1204 = vsub.f32 %v1124, %v1162
        %v1205 = vsub.f32 %v1125, %v1165
        %v1206 = vsub.f32 %v1126, %v1165
        %v1207 = vsub.f32 %v1127, %v1168
        %v1208 = vsub.f32 %v1128, %v1168
        %v1209 = vsub.f32 %v1129, %v1171
        %v1210 = vsub.f32 %v1130, %v1171
        %v1211 = vsub.f32 %v1131, %v1174
        %v1212 = vsub.f32 %v1132, %v1174
        %v1213 = vsub.f32 %v1133, %v1177
        %v1214 = vsub.f32 %v1134, %v1177
        %v1215 = vsub.f32 %v1135, %v1180
        %v1216 = vsub.f32 %v1136, %v1180
        %v1217 = vsub.f32 %v1137, %v1183
        %v1218 = vsub.f32 %v1138, %v1183
        %v1219 = vsub.f32 %v1139, %v1186
        %v1220 = vsub.f32 %v1140, %v1186
        %v1221 = vsub.f32 %v1141, %v1189
        %v1222 = vsub.f32 %v1142, %v1189
        %v1223 = vsub.f32 %v1143, %v1192
        %v1224 = vsub.f32 %v1144, %v1192
        %v1225 = vmul.f32 %v1193, 1.442695
        %v1226 = vpow.pop %v1225
        %v1227 = vmul.f32 %v1194, 1.442695
        %v1228 = vpow.pop %v1227
        %v1229 = vmul.f32 %v1195, 1.442695
        %v1230 = vpow.pop %v1229
        %v1231 = vmul.f32 %v1196, 1.442695
        %v1232 = vpow.pop %v1231
        %v1233 = vmul.f32 %v1197, 1.442695
        %v1234 = vpow.pop %v1233
        %v1235 = vmul.f32 %v1198, 1.442695
        %v1236 = vpow.pop %v1235
        %v1237 = vmul.f32 %v1199, 1.442695
        %v1238 = vpow.pop %v1237
        %v1239 = vmul.f32 %v1200, 1.442695
        %v1240 = vpow.pop %v1239
        %v1241 = vmul.f32 %v1201, 1.442695
        %v1242 = vpow.pop %v1241
        %v1243 = vmul.f32 %v1202, 1.442695
        %v1244 = vpow.pop %v1243
        %v1245 = vmul.f32 %v1203, 1.442695
        %v1246 = vpow.pop %v1245
        %v1247 = vmul.f32 %v1204, 1.442695
        %v1248 = vpow.pop %v1247
        %v1249 = vmul.f32 %v1205, 1.442695
        %v1250 = vpow.pop %v1249
        %v1251 = vmul.f32 %v1206, 1.442695
        %v1252 = vpow.pop %v1251
        %v1253 = vmul.f32 %v1207, 1.442695
        %v1254 = vpow.pop %v1253
        %v1255 = vmul.f32 %v1208, 1.442695
        %v1256 = vpow.pop %v1255
        %v1257 = vmul.f32 %v1209, 1.442695
        %v1258 = vpow.pop %v1257
        %v1259 = vmul.f32 %v1210, 1.442695
        %v1260 = vpow.pop %v1259
        %v1261 = vmul.f32 %v1211, 1.442695
        %v1262 = vpow.pop %v1261
        %v1263 = vmul.f32 %v1212, 1.442695
        %v1264 = vpow.pop %v1263
        %v1265 = vmul.f32 %v1213, 1.442695
        %v1266 = vpow.pop %v1265
        %v1267 = vmul.f32 %v1214, 1.442695
        %v1268 = vpow.pop %v1267
        %v1269 = vmul.f32 %v1215, 1.442695
        %v1270 = vpow.pop %v1269
        %v1271 = vmul.f32 %v1216, 1.442695
        %v1272 = vpow.pop %v1271
        %v1273 = vmul.f32 %v1217, 1.442695
        %v1274 = vpow.pop %v1273
        %v1275 = vmul.f32 %v1218, 1.442695
        %v1276 = vpow.pop %v1275
        %v1277 = vmul.f32 %v1219, 1.442695
        %v1278 = vpow.pop %v1277
        %v1279 = vmul.f32 %v1220, 1.442695
        %v1280 = vpow.pop %v1279
        %v1281 = vmul.f32 %v1221, 1.442695
        %v1282 = vpow.pop %v1281
        %v1283 = vmul.f32 %v1222, 1.442695
        %v1284 = vpow.pop %v1283
        %v1285 = vmul.f32 %v1223, 1.442695
        %v1286 = vpow.pop %v1285
        %v1287 = vmul.f32 %v1224, 1.442695
        %v1288 = vpow.pop %v1287
        %v1289 = vadd.f32 %v1226, %v1228
        %1290 = vadd.xlane.f32.xlu0 %v1289
        %v1291 = vpop.xlane.xlu0 %1290
        %v1292 = vadd.f32 %v1230, %v1232
        %1293 = vadd.xlane.f32.xlu0 %v1292
        %v1294 = vpop.xlane.xlu0 %1293
        %v1295 = vadd.f32 %v1234, %v1236
        %1296 = vadd.xlane.f32.xlu0 %v1295
        %v1297 = vpop.xlane.xlu0 %1296
        %v1298 = vadd.f32 %v1238, %v1240
        %1299 = vadd.xlane.f32.xlu0 %v1298
        %v1300 = vpop.xlane.xlu0 %1299
        %v1301 = vadd.f32 %v1242, %v1244
        %1302 = vadd.xlane.f32.xlu0 %v1301
        %v1303 = vpop.xlane.xlu0 %1302
        %v1304 = vadd.f32 %v1246, %v1248
        %1305 = vadd.xlane.f32.xlu0 %v1304
        %v1306 = vpop.xlane.xlu0 %1305
        %v1307 = vadd.f32 %v1250, %v1252
        %1308 = vadd.xlane.f32.xlu0 %v1307
        %v1309 = vpop.xlane.xlu0 %1308
        %v1310 = vadd.f32 %v1254, %v1256
        %1311 = vadd.xlane.f32.xlu0 %v1310
        %v1312 = vpop.xlane.xlu0 %1311
        %v1313 = vadd.f32 %v1258, %v1260
        %1314 = vadd.xlane.f32.xlu0 %v1313
        %v1315 = vpop.xlane.xlu0 %1314
        %v1316 = vadd.f32 %v1262, %v1264
        %1317 = vadd.xlane.f32.xlu0 %v1316
        %v1318 = vpop.xlane.xlu0 %1317
        %v1319 = vadd.f32 %v1266, %v1268
        %1320 = vadd.xlane.f32.xlu0 %v1319
        %v1321 = vpop.xlane.xlu0 %1320
        %v1322 = vadd.f32 %v1270, %v1272
        %1323 = vadd.xlane.f32.xlu0 %v1322
        %v1324 = vpop.xlane.xlu0 %1323
        %v1325 = vadd.f32 %v1274, %v1276
        %1326 = vadd.xlane.f32.xlu0 %v1325
        %v1327 = vpop.xlane.xlu0 %1326
        %v1328 = vadd.f32 %v1278, %v1280
        %1329 = vadd.xlane.f32.xlu0 %v1328
        %v1330 = vpop.xlane.xlu0 %1329
        %v1331 = vadd.f32 %v1282, %v1284
        %1332 = vadd.xlane.f32.xlu0 %v1331
        %v1333 = vpop.xlane.xlu0 %1332
        %v1334 = vadd.f32 %v1286, %v1288
        %1335 = vadd.xlane.f32.xlu0 %v1334
        %v1336 = vpop.xlane.xlu0 %1335
        %v1337 = vrcp.pop %v1291
        %v1338 = vrcp.pop %v1294
        %v1339 = vrcp.pop %v1297
        %v1340 = vrcp.pop %v1300
        %v1341 = vrcp.pop %v1303
        %v1342 = vrcp.pop %v1306
        %v1343 = vrcp.pop %v1309
        %v1344 = vrcp.pop %v1312
        %v1345 = vrcp.pop %v1315
        %v1346 = vrcp.pop %v1318
        %v1347 = vrcp.pop %v1321
        %v1348 = vrcp.pop %v1324
        %v1349 = vrcp.pop %v1327
        %v1350 = vrcp.pop %v1330
        %v1351 = vrcp.pop %v1333
        %v1352 = vrcp.pop %v1336
        %v1353 = vmul.f32 %v1226, %v1337
        %v1354 = vmul.f32 %v1228, %v1337
        %v1355 = vmul.f32 %v1230, %v1338
        %v1356 = vmul.f32 %v1232, %v1338
        %v1357 = vmul.f32 %v1234, %v1339
        %v1358 = vmul.f32 %v1236, %v1339
        %v1359 = vmul.f32 %v1238, %v1340
        %v1360 = vmul.f32 %v1240, %v1340
        %v1361 = vmul.f32 %v1242, %v1341
        %v1362 = vmul.f32 %v1244, %v1341
        %v1363 = vmul.f32 %v1246, %v1342
        %v1364 = vmul.f32 %v1248, %v1342
        %v1365 = vmul.f32 %v1250, %v1343
        %v1366 = vmul.f32 %v1252, %v1343
        %v1367 = vmul.f32 %v1254, %v1344
        %v1368 = vmul.f32 %v1256, %v1344
        %v1369 = vmul.f32 %v1258, %v1345
        %v1370 = vmul.f32 %v1260, %v1345
        %v1371 = vmul.f32 %v1262, %v1346
        %v1372 = vmul.f32 %v1264, %v1346
        %v1373 = vmul.f32 %v1266, %v1347
        %v1374 = vmul.f32 %v1268, %v1347
        %v1375 = vmul.f32 %v1270, %v1348
        %v1376 = vmul.f32 %v1272, %v1348
        %v1377 = vmul.f32 %v1274, %v1349
        %v1378 = vmul.f32 %v1276, %v1349
        %v1379 = vmul.f32 %v1278, %v1350
        %v1380 = vmul.f32 %v1280, %v1350
        %v1381 = vmul.f32 %v1282, %v1351
        %v1382 = vmul.f32 %v1284, %v1351
        %v1383 = vmul.f32 %v1286, %v1352
        %v1384 = vmul.f32 %v1288, %v1352
        %v1385 = vpack.c.bf16 %v1355, %v1353
        %v1386 = vpack.c.bf16 %v1356, %v1354
        %v1387 = vpack.c.bf16 %v1359, %v1357
        %v1388 = vpack.c.bf16 %v1360, %v1358
        %v1389 = vpack.c.bf16 %v1363, %v1361
        %v1390 = vpack.c.bf16 %v1364, %v1362
        %v1391 = vpack.c.bf16 %v1367, %v1365
        %v1392 = vpack.c.bf16 %v1368, %v1366
        %v1393 = vpack.c.bf16 %v1371, %v1369
        %v1394 = vpack.c.bf16 %v1372, %v1370
        %v1395 = vpack.c.bf16 %v1375, %v1373
        %v1396 = vpack.c.bf16 %v1376, %v1374
        %v1397 = vpack.c.bf16 %v1379, %v1377
        %v1398 = vpack.c.bf16 %v1380, %v1378
        %v1399 = vpack.c.bf16 %v1383, %v1381
        %v1400 = vpack.c.bf16 %v1384, %v1382
        %v1401 = vpack.c.bf16 %v379, %v376
        %v1402 = vpack.c.bf16 %v387, %v384
        %v1403 = vpack.c.bf16 %v395, %v392
        %v1404 = vpack.c.bf16 %v403, %v400
        %v1405 = vpack.c.bf16 %v411, %v408
        %v1406 = vpack.c.bf16 %v419, %v416
        %v1407 = vpack.c.bf16 %v427, %v424
        %v1408 = vpack.c.bf16 %v435, %v432
        %v1409 = vpack.c.bf16 %v443, %v440
        %v1410 = vpack.c.bf16 %v451, %v448
        %v1411 = vpack.c.bf16 %v459, %v456
        %v1412 = vpack.c.bf16 %v467, %v464
        %v1413 = vpack.c.bf16 %v475, %v472
        %v1414 = vpack.c.bf16 %v483, %v480
        %v1415 = vpack.c.bf16 %v491, %v488
        %v1416 = vpack.c.bf16 %v499, %v496
        %1417 = vmatprep.subr.bf16.mxu0 0
        %1418 = vmatpush1.bf16.msra.mxu0 %v1401
        %1419 = vmatprep.subr.bf16.mxu0 0
        %1420 = vmatpush1.bf16.msra.mxu0 %v1402
        %1421 = vmatprep.subr.bf16.mxu0 0
        %1422 = vmatpush1.bf16.msra.mxu0 %v1403
        %1423 = vmatprep.subr.bf16.mxu0 0
        %1424 = vmatpush1.bf16.msra.mxu0 %v1404
        %1425 = vmatprep.subr.bf16.mxu0 0
        %1426 = vmatpush1.bf16.msra.mxu0 %v1405
        %1427 = vmatprep.subr.bf16.mxu0 0
        %1428 = vmatpush1.bf16.msra.mxu0 %v1406
        %1429 = vmatprep.subr.bf16.mxu0 0
        %1430 = vmatpush1.bf16.msra.mxu0 %v1407
        %1431 = vmatprep.subr.bf16.mxu0 0
        %1432 = vmatpush1.bf16.msra.mxu0 %v1408
        %1433 = vmatprep.subr.bf16.mxu0 0
        %1434 = vmatpush1.bf16.msra.mxu0 %v1409
        %1435 = vmatprep.subr.bf16.mxu0 0
        %1436 = vmatpush1.bf16.msra.mxu0 %v1410
        %1437 = vmatprep.subr.bf16.mxu0 0
        %1438 = vmatpush1.bf16.msra.mxu0 %v1411
        %1439 = vmatprep.subr.bf16.mxu0 0
        %1440 = vmatpush1.bf16.msra.mxu0 %v1412
        %1441 = vmatprep.subr.bf16.mxu0 0
        %1442 = vmatpush1.bf16.msra.mxu0 %v1413
        %1443 = vmatprep.subr.bf16.mxu0 0
        %1444 = vmatpush1.bf16.msra.mxu0 %v1414
        %1445 = vmatprep.subr.bf16.mxu0 0
        %1446 = vmatpush1.bf16.msra.mxu0 %v1415
        %1447 = vmatprep.subr.bf16.mxu0 0
        %1448 = vmatpush1.bf16.msra.mxu0 %v1416
        %1449 = vmatprep.mubr.bf16.mxu0 %v1386
        %1450 = vmatmul.mubr.bf16.gmra.mrb[0].mxu0 %v1385
        %v1451 = vpop.f32.mrb[0].mxu0
        %v1452 = vadd.f32 0.0, %v1451
        %v1453 = vpop.f32.mrb[0].mxu0
        %v1454 = vpop.f32.mrb[0].mxu0
        %v1455 = vadd.f32 0.0, %v1454
        %v1456 = vpop.f32.mrb[0].mxu0
        %1457 = vmatprep.mubr.bf16.mxu0 %v1388
        %1458 = vmatmul.mubr.bf16.gmra.mrb[0].mxu0 %v1387
        %v1459 = vpop.f32.mrb[0].mxu0
        %v1460 = vadd.f32 0.0, %v1459
        %v1461 = vpop.f32.mrb[0].mxu0
        %v1462 = vpop.f32.mrb[0].mxu0
        %v1463 = vadd.f32 0.0, %v1462
        %v1464 = vpop.f32.mrb[0].mxu0
        %1465 = vmatprep.mubr.bf16.mxu0 %v1390
        %1466 = vmatmul.mubr.bf16.gmra.mrb[0].mxu0 %v1389
        %v1467 = vpop.f32.mrb[0].mxu0
        %v1468 = vadd.f32 0.0, %v1467
        %v1469 = vpop.f32.mrb[0].mxu0
        %v1470 = vpop.f32.mrb[0].mxu0
        %v1471 = vadd.f32 0.0, %v1470
        %v1472 = vpop.f32.mrb[0].mxu0
        %1473 = vmatprep.mubr.bf16.mxu0 %v1392
        %1474 = vmatmul.mubr.bf16.gmra.mrb[0].mxu0 %v1391
        %v1475 = vpop.f32.mrb[0].mxu0
        %v1476 = vadd.f32 0.0, %v1475
        %v1477 = vpop.f32.mrb[0].mxu0
        %v1478 = vpop.f32.mrb[0].mxu0
        %v1479 = vadd.f32 0.0, %v1478
        %v1480 = vpop.f32.mrb[0].mxu0
        %1481 = vmatprep.mubr.bf16.mxu0 %v1394
        %1482 = vmatmul.mubr.bf16.gmra.mrb[0].mxu0 %v1393
        %v1483 = vpop.f32.mrb[0].mxu0
        %v1484 = vadd.f32 0.0, %v1483
        %v1485 = vpop.f32.mrb[0].mxu0
        %v1486 = vpop.f32.mrb[0].mxu0
        %v1487 = vadd.f32 0.0, %v1486
        %v1488 = vpop.f32.mrb[0].mxu0
        %1489 = vmatprep.mubr.bf16.mxu0 %v1396
        %1490 = vmatmul.mubr.bf16.gmra.mrb[0].mxu0 %v1395
        %v1491 = vpop.f32.mrb[0].mxu0
        %v1492 = vadd.f32 0.0, %v1491
        %v1493 = vpop.f32.mrb[0].mxu0
        %v1494 = vpop.f32.mrb[0].mxu0
        %v1495 = vadd.f32 0.0, %v1494
        %v1496 = vpop.f32.mrb[0].mxu0
        %1497 = vmatprep.mubr.bf16.mxu0 %v1398
        %1498 = vmatmul.mubr.bf16.gmra.mrb[0].mxu0 %v1397
        %v1499 = vpop.f32.mrb[0].mxu0
        %v1500 = vadd.f32 0.0, %v1499
        %v1501 = vpop.f32.mrb[0].mxu0
        %v1502 = vpop.f32.mrb[0].mxu0
        %v1503 = vadd.f32 0.0, %v1502
        %v1504 = vpop.f32.mrb[0].mxu0
        %1505 = vmatprep.mubr.bf16.mxu0 %v1400
        %1506 = vmatmul.mubr.bf16.gmra.mrb[0].mxu0 %v1399
        %v1507 = vpop.f32.mrb[0].mxu0
        %v1508 = vadd.f32 0.0, %v1507
        %v1509 = vpop.f32.mrb[0].mxu0
        %v1510 = vpop.f32.mrb[0].mxu0
        %v1511 = vadd.f32 0.0, %v1510
        %v1512 = vpop.f32.mrb[0].mxu0
        %1513 = vdwg.mxu0
        %v1514 = vmin.f32 %v1452, 0.0
        %v1515 = vmin.f32 %v1455, 0.0
        %v1516 = vmin.f32 %v1460, 0.0
        %v1517 = vmin.f32 %v1463, 0.0
        %v1518 = vmin.f32 %v1468, 0.0
        %v1519 = vmin.f32 %v1471, 0.0
        %v1520 = vmin.f32 %v1476, 0.0
        %v1521 = vmin.f32 %v1479, 0.0
        %v1522 = vmin.f32 %v1484, 0.0
        %v1523 = vmin.f32 %v1487, 0.0
        %v1524 = vmin.f32 %v1492, 0.0
        %v1525 = vmin.f32 %v1495, 0.0
        %v1526 = vmin.f32 %v1500, 0.0
        %v1527 = vmin.f32 %v1503, 0.0
        %v1528 = vmin.f32 %v1508, 0.0
        %v1529 = vmin.f32 %v1511, 0.0
        %v1530 = vmul.f32 %v1514, 1.442695
        %v1531 = vpow.pop %v1530
        %v1532 = vmul.f32 %v1515, 1.442695
        %v1533 = vpow.pop %v1532
        %v1534 = vmul.f32 %v1516, 1.442695
        %v1535 = vpow.pop %v1534
        %v1536 = vmul.f32 %v1517, 1.442695
        %v1537 = vpow.pop %v1536
        %v1538 = vmul.f32 %v1518, 1.442695
        %v1539 = vpow.pop %v1538
        %v1540 = vmul.f32 %v1519, 1.442695
        %v1541 = vpow.pop %v1540
        %v1542 = vmul.f32 %v1520, 1.442695
        %v1543 = vpow.pop %v1542
        %v1544 = vmul.f32 %v1521, 1.442695
        %v1545 = vpow.pop %v1544
        %v1546 = vmul.f32 %v1522, 1.442695
        %v1547 = vpow.pop %v1546
        %v1548 = vmul.f32 %v1523, 1.442695
        %v1549 = vpow.pop %v1548
        %v1550 = vmul.f32 %v1524, 1.442695
        %v1551 = vpow.pop %v1550
        %v1552 = vmul.f32 %v1525, 1.442695
        %v1553 = vpow.pop %v1552
        %v1554 = vmul.f32 %v1526, 1.442695
        %v1555 = vpow.pop %v1554
        %v1556 = vmul.f32 %v1527, 1.442695
        %v1557 = vpow.pop %v1556
        %v1558 = vmul.f32 %v1528, 1.442695
        %v1559 = vpow.pop %v1558
        %v1560 = vmul.f32 %v1529, 1.442695
        %v1561 = vpow.pop %v1560
        %v1562 = vsub.f32 %v1531, 1.0
        %v1563 = vsub.f32 %v1533, 1.0
        %v1564 = vsub.f32 %v1535, 1.0
        %v1565 = vsub.f32 %v1537, 1.0
        %v1566 = vsub.f32 %v1539, 1.0
        %v1567 = vsub.f32 %v1541, 1.0
        %v1568 = vsub.f32 %v1543, 1.0
        %v1569 = vsub.f32 %v1545, 1.0
        %v1570 = vsub.f32 %v1547, 1.0
        %v1571 = vsub.f32 %v1549, 1.0
        %v1572 = vsub.f32 %v1551, 1.0
        %v1573 = vsub.f32 %v1553, 1.0
        %v1574 = vsub.f32 %v1555, 1.0
        %v1575 = vsub.f32 %v1557, 1.0
        %v1576 = vsub.f32 %v1559, 1.0
        %v1577 = vsub.f32 %v1561, 1.0
        %vm1578 = vcmp.gt.f32.partialorder %v1452, 0.0
        %vm1579 = vcmp.gt.f32.partialorder %v1455, 0.0
        %vm1580 = vcmp.gt.f32.partialorder %v1460, 0.0
        %vm1581 = vcmp.gt.f32.partialorder %v1463, 0.0
        %vm1582 = vcmp.gt.f32.partialorder %v1468, 0.0
        %vm1583 = vcmp.gt.f32.partialorder %v1471, 0.0
        %vm1584 = vcmp.gt.f32.partialorder %v1476, 0.0
        %vm1585 = vcmp.gt.f32.partialorder %v1479, 0.0
        %vm1586 = vcmp.gt.f32.partialorder %v1484, 0.0
        %vm1587 = vcmp.gt.f32.partialorder %v1487, 0.0
        %vm1588 = vcmp.gt.f32.partialorder %v1492, 0.0
        %vm1589 = vcmp.gt.f32.partialorder %v1495, 0.0
        %vm1590 = vcmp.gt.f32.partialorder %v1500, 0.0
        %vm1591 = vcmp.gt.f32.partialorder %v1503, 0.0
        %vm1592 = vcmp.gt.f32.partialorder %v1508, 0.0
        %vm1593 = vcmp.gt.f32.partialorder %v1511, 0.0
        %v1594 = vsel %vm1578, %v1452, %v1562
        %v1595 = vsel %vm1579, %v1455, %v1563
        %v1596 = vsel %vm1580, %v1460, %v1564
        %v1597 = vsel %vm1581, %v1463, %v1565
        %v1598 = vsel %vm1582, %v1468, %v1566
        %v1599 = vsel %vm1583, %v1471, %v1567
        %v1600 = vsel %vm1584, %v1476, %v1568
        %v1601 = vsel %vm1585, %v1479, %v1569
        %v1602 = vsel %vm1586, %v1484, %v1570
        %v1603 = vsel %vm1587, %v1487, %v1571
        %v1604 = vsel %vm1588, %v1492, %v1572
        %v1605 = vsel %vm1589, %v1495, %v1573
        %v1606 = vsel %vm1590, %v1500, %v1574
        %v1607 = vsel %vm1591, %v1503, %v1575
        %v1608 = vsel %vm1592, %v1508, %v1576
        %v1609 = vsel %vm1593, %v1511, %v1577
        %1610 = vst [vmem:[%s220] sm:$0xff] %v1594
        %1611 = vst [vmem:[%s220 + $0x8] sm:$0xff] %v1595
        %1612 = vst [vmem:[%s220 + $0x10] sm:$0xff] %v1596
        %1613 = vst [vmem:[%s220 + $0x18] sm:$0xff] %v1597
        %1614 = vst [vmem:[%s220 + $0x20] sm:$0xff] %v1598
        %1615 = vst [vmem:[%s220 + $0x28] sm:$0xff] %v1599
        %1616 = vst [vmem:[%s220 + $0x30] sm:$0xff] %v1600
        %1617 = vst [vmem:[%s220 + $0x38] sm:$0xff] %v1601
        %1618 = vst [vmem:[%s220 + $0x40] sm:$0xff] %v1602
        %1619 = vst [vmem:[%s220 + $0x48] sm:$0xff] %v1603
        %1620 = vst [vmem:[%s220 + $0x50] sm:$0xff] %v1604
        %1621 = vst [vmem:[%s220 + $0x58] sm:$0xff] %v1605
        %1622 = vst [vmem:[%s220 + $0x60] sm:$0xff] %v1606
        %1623 = vst [vmem:[%s220 + $0x68] sm:$0xff] %v1607
        %1624 = vst [vmem:[%s220 + $0x70] sm:$0xff] %v1608
        %1625 = vst [vmem:[%s220 + $0x78] sm:$0xff] %v1609
        %s1626 = sand.u32 %s137, 1
        %s1627 = scalar_lea.sflag [#allocation4], %s1626
        %s1628 = sand.u32 %s137, 1
        %s1629 = smul.addr %s1628, 128
        %s1630 = scalar_lea.vmem [#allocation3], %s1629
        // Predicated region
        $region41: #{tpu_custom_call.1} parent=39 // pred_check
          %p1631 = pneg %p147
        $region42: #{tpu_custom_call.1} parent=39 // pred_check_branch
          %1633 = sbr.rel (%p1631) target = $region44
        $region43: #{tpu_custom_call.1} parent=39 // pred_region
          %s1634 = smul.u32 16, %s19
          %s1636 = ssub.s32 2048, 2048
          %1637 = vsyncadd %s1627, %s1636
          %s1638 = smul.addr %s1634, 128
          %s1639 = scalar_lea.hbm %s5, %s1638
          %s1640 = sshll.u32 %s1630, 4
          %s1641 = int_to_ptr.vmem [resolvable:$true] %s1640
          %1646 = dma.vmem_to_hbm [thread:$0]  %s1641, 2048, %s1639, %s1627, 128, 128, 8
        $region44: #{tpu_custom_call.1} parent=39 // pred_fallthru
          _
      $region40: #{tpu_custom_call.1} parent=5 // pred_fallthru
        _
      %p1647 = scmp.le.s32.totalorder 2, %s14
      // Predicated region
      $region45: #{tpu_custom_call.1} parent=5 // pred_check
        %p1648 = pneg %p1647
      $region46: #{tpu_custom_call.1} parent=5 // pred_check_branch
        %1650 = sbr.rel (%p1648) target = $region48
      $region47: #{tpu_custom_call.1} parent=5 // pred_region
        %s1651 = ssub.s32 %s14, 2
        // Predicated region
        $region49: #{tpu_custom_call.1} parent=47 // pred_check
          %p1652 = pneg %p153
        $region50: #{tpu_custom_call.1} parent=47 // pred_check_branch
          %1654 = sbr.rel (%p1652) target = $region52
        $region51: #{tpu_custom_call.1} parent=47 // pred_region
          %s1655 = sand.u32 %s138, 1
          %s1656 = scalar_lea.sflag [#allocation4], %s1655
          %s1657 = sand.u32 %s138, 1
          %s1658 = smul.addr %s1657, 128
          %s1659 = scalar_lea.vmem [#allocation3], %s1658
          %1660 = dma.done %s1656, 2048
        $region52: #{tpu_custom_call.1} parent=47 // pred_fallthru
          _
      $region48: #{tpu_custom_call.1} parent=5 // pred_fallthru
        _
    $region6: #{tpu_custom_call.1} parent=1 // loop_footer
      %s18 = sadd.s32 1, %s14
    $region7: #{tpu_custom_call.1} parent=1 // loop_footer_branch
      %13 = sbr.rel target = $region3
    $region8: #{tpu_custom_call.1} parent=1 // loop_exit
      _
    %1661 = vsyncpa [#allocation4], 1
    %s1662 = scalar_lea.sflag [#allocation4], 1
    %1663 = vsyncpa %s1662, 1

</llo_original>
